<compile_context>
chip_gen: v6e
topology: v6e:2x2x1
jax: 0.10.0
libtpu: 0.0.40
codegen_flags: <defaults>
</compile_context>

<pallas_src>
import jax
import jax.numpy as jnp
from jax.experimental import pallas as pl
from jax.experimental.pallas import tpu as pltpu

# Module hyper-parameters (as implied by the PyTorch source).
EMBEDDING_DIM = 50
HIDDEN_DIM = 100            # fce/fcf each produce hidden_dim // 2
FEATURE_HIDDEN_DIM = 100
VOCAB_SIZE = 64
NUM_FEATURES = 4
OUTPUT_SIZE = 9


def _nernn_kernel(packed_ref,                 # (3 + nf*3, tb) int32, batch on lanes
                  temb_ref, bfce_ref,         # (h2, 3V), (h2, 1)
                  wff_ref, bff_ref,           # (h2, nf*3), (h2, 1)
                  w3a_ref, w3b_ref, b3_ref,   # (O, h2), (O, h2), (O, 1)
                  out_ref):                   # (O, tb)
    three_v = temb_ref.shape[1]               # 3 * VOCAB_SIZE
    v = three_v // 3
    tb = packed_ref.shape[1]

    p = packed_ref[...]                       # (15, tb) int32
    w0 = p[0:1, :]                            # (1, tb) word ids
    w1 = p[1:2, :]
    w2 = p[2:3, :]
    f_t = p[3:, :].astype(jnp.float32)        # (nf*3, tb) features, cast in-kernel

    # ---- x0 path: embedding gather + fce fused as a transposed one-hot MXU
    #      matmul over the precomputed tables T_k = emb @ Wfce_k.
    sub = jax.lax.broadcasted_iota(jnp.int32, (three_v, tb), 0)
    hit = (sub == w0) | (sub == (w1 + v)) | (sub == (w2 + 2 * v))
    onehot_t = hit.astype(jnp.float32)        # (3V, tb)

    x0 = jnp.dot(temb_ref[...], onehot_t,
                 preferred_element_type=jnp.float32) + bfce_ref[...]
    x0 = jnp.maximum(x0, 0.0)                 # (h2, tb)

    # ---- x1 path: featuresEmb and fcf folded into ONE affine layer (wrapper).
    x1 = jnp.dot(wff_ref[...], f_t,
                 preferred_element_type=jnp.float32) + bff_ref[...]
    x1 = jnp.maximum(x1, 0.0)                 # (h2, tb)

    # ---- fc3(concat([x0, x1])) == W3a @ x0 + W3b @ x1 + b3 (transposed form)
    logits = (jnp.dot(w3a_ref[...], x0, preferred_element_type=jnp.float32)
              + jnp.dot(w3b_ref[...], x1, preferred_element_type=jnp.float32)
              + b3_ref[...])                  # (O, tb)

    # ---- log_softmax over the class axis (axis 0 in transposed layout)
    m = jnp.max(logits, axis=0, keepdims=True)
    shifted = logits - m
    lse = jnp.log(jnp.sum(jnp.exp(shifted), axis=0, keepdims=True))
    out_ref[...] = shifted - lse              # lane-dense (O, tb) store


def _pick_batch_tile(B):
    # >= 2 balanced grid steps when possible (v7x megacore), tiles in [256,1024].
    half = (B + 1) // 2
    tb = ((half + 255) // 256) * 256
    return max(256, min(1024, tb))


def nernn_forward(words, features, params, *, batch_tile=None):
    B = words.shape[0]
    E = EMBEDDING_DIM
    h2 = HIDDEN_DIM // 2
    in_f = NUM_FEATURES * 3
    three_v = 3 * VOCAB_SIZE
    n_in = 3 + in_f

    tb = _pick_batch_tile(B) if batch_tile is None else batch_tile
    grid = (pl.cdiv(B, tb),)   # boundary block is clipped by Pallas; no pad/slice

    # --- wrapper-side weight prep (tiny, one-off) ---------------------------
    # Fold embedding table into fce:  T_k = emb @ Wfce[k*E:(k+1)*E]
    emb = params["embedding"]                              # (V, E), row 0 == 0
    wfce, bfce = params["fce_w"], params["fce_b"]          # (3E, h2), (1, h2)
    t_comb_t = jnp.concatenate(
        [emb @ wfce[k * E:(k + 1) * E] for k in range(3)], axis=0).T  # (h2, 3V)
    bfce_c = bfce.T                                        # (h2, 1)

    # Fold featuresEmb + fcf (no nonlinearity between them in the reference).
    wfemb, bfemb = params["femb_w"], params["femb_b"]      # (in_f, FH), (1, FH)
    wfcf, bfcf = params["fcf_w"], params["fcf_b"]          # (FH, h2), (1, h2)
    w_ff_t = (wfemb @ wfcf).T                              # (h2, in_f)
    b_ff_c = (bfemb @ wfcf + bfcf).T                       # (h2, 1)

    wfc3, bfc3 = params["fc3_w"], params["fc3_b"]          # (H, O), (1, O)
    w3a_t = wfc3[:h2].T                                    # (O, h2)
    w3b_t = wfc3[h2:].T                                    # (O, h2)
    b3_c = bfc3.T                                          # (O, 1)

    # --- single packed int32 input stream, batch on the lane axis -----------
    packed = jnp.concatenate(
        [words.astype(jnp.int32).T,                        # (3, B)
         features.reshape(B, in_f).astype(jnp.int32).T],   # (in_f, B)
        axis=0)                                            # (n_in, B)

    full = lambda shape: pl.BlockSpec(shape, lambda i: (0, 0))

    out_t = pl.pallas_call(
        _nernn_kernel,
        out_shape=jax.ShapeDtypeStruct((OUTPUT_SIZE, B), jnp.float32),
        grid=grid,
        in_specs=[
            pl.BlockSpec((n_in, tb), lambda i: (0, i)),    # packed ints
            full((h2, three_v)), full((h2, 1)),            # fused emb*fce, bias
            full((h2, in_f)), full((h2, 1)),               # fused femb*fcf, bias
            full((OUTPUT_SIZE, h2)), full((OUTPUT_SIZE, h2)),  # fc3 split
            full((OUTPUT_SIZE, 1)),                        # fc3 bias
        ],
        out_specs=pl.BlockSpec((OUTPUT_SIZE, tb), lambda i: (0, i)),
        compiler_params=pltpu.CompilerParams(
            dimension_semantics=("parallel",)),
    )(packed, t_comb_t, bfce_c, w_ff_t, b_ff_c, w3a_t, w3b_t, b3_c)

    # Tiny (O, B) -> (B, O) transpose to restore the module's output layout.
    return out_t.T


def init_params(key):
    """Deterministic synthetic parameters (shapes match the torch module)."""
    ks = jax.random.split(key, 9)
    h2 = HIDDEN_DIM // 2
    in_f = NUM_FEATURES * 3

    def lin(kw, kb, fan_in, fan_out):
        bound = 1.0 / jnp.sqrt(jnp.float32(fan_in))
        w = jax.random.uniform(kw, (fan_in, fan_out), jnp.float32, -bound, bound)
        b = jax.random.uniform(kb, (1, fan_out), jnp.float32, -bound, bound)
        return w, b

    emb = jax.random.normal(ks[0], (VOCAB_SIZE, EMBEDDING_DIM), jnp.float32)
    emb = emb.at[0].set(0.0)  # padding_idx=0

    fce_w, fce_b = lin(ks[1], ks[2], 3 * EMBEDDING_DIM, h2)
    femb_w, femb_b = lin(ks[3], ks[4], in_f, FEATURE_HIDDEN_DIM)
    fcf_w, fcf_b = lin(ks[5], ks[6], FEATURE_HIDDEN_DIM, h2)
    fc3_w, fc3_b = lin(ks[7], ks[8], HIDDEN_DIM, OUTPUT_SIZE)

    return dict(embedding=emb,
                fce_w=fce_w, fce_b=fce_b,
                femb_w=femb_w, femb_b=femb_b,
                fcf_w=fcf_w, fcf_b=fcf_b,
                fc3_w=fc3_w, fc3_b=fc3_b)


def reference_forward(words, features, params):
    """Pure-JAX reference mirroring the PyTorch forward, for validation."""
    B = words.shape[0]
    x0 = jnp.take(params["embedding"], words, axis=0).reshape(B, -1)
    x0 = jax.nn.relu(x0 @ params["fce_w"] + params["fce_b"])
    f = features.reshape(B, -1).astype(jnp.float32)
    x1 = f @ params["femb_w"] + params["femb_b"]
    x1 = jax.nn.relu(x1 @ params["fcf_w"] + params["fcf_b"])
    x = jnp.concatenate([x0, x1], axis=1)
    logits = x @ params["fc3_w"] + params["fc3_b"]
    return jax.nn.log_softmax(logits, axis=1)


if __name__ == "__main__":
    key = jax.random.PRNGKey(0)
    k_param, k_words, k_feat = jax.random.split(key, 3)

    # Non-multiple-of-tile batch to exercise boundary-block clipping; the tile
    # heuristic gives tb=256 -> a 2-step grid (keeps both v7x TCs busy).
    B = 300
    params = init_params(k_param)
    words = jax.random.randint(k_words, (B, 3), 0, VOCAB_SIZE, dtype=jnp.int32)
    features = jax.random.randint(
        k_feat, (B, NUM_FEATURES, 3), 0, 2, dtype=jnp.int32)

    out = nernn_forward(words, features, params)
    out = jax.block_until_ready(out)

    ref = reference_forward(words, features, params)
    assert out.shape == (B, OUTPUT_SIZE)
    assert jnp.allclose(out, ref, atol=1e-4, rtol=1e-4), \
        float(jnp.max(jnp.abs(out - ref)))
    print("KERNEL_OK")
</pallas_src>

<mosaic_0001>
module attributes {stable_mosaic.version = 11 : i64} {
  func.func @_nernn_kernel(%arg0: i32, %arg1: memref<15x256xi32, #tpu.memory_space<vmem>>, %arg2: memref<50x192xf32, #tpu.memory_space<vmem>>, %arg3: memref<50x1xf32, #tpu.memory_space<vmem>>, %arg4: memref<50x12xf32, #tpu.memory_space<vmem>>, %arg5: memref<50x1xf32, #tpu.memory_space<vmem>>, %arg6: memref<9x50xf32, #tpu.memory_space<vmem>>, %arg7: memref<9x50xf32, #tpu.memory_space<vmem>>, %arg8: memref<9x1xf32, #tpu.memory_space<vmem>>, %arg9: memref<9x256xf32, #tpu.memory_space<vmem>>) attributes {dimension_semantics = [#tpu.dimension_semantics<parallel>], iteration_bounds = array<i64: 2>, scalar_prefetch = 0 : i64, scratch_operands = 0 : i64, tpu.core_type = #tpu.core_type<tc>, window_params = [{transform_indices = @transform_0, window_bounds = array<i64: 15, 256>}, {pipeline_mode = #tpu.pipeline_mode<synchronous>, transform_indices = @transform_1, window_bounds = array<i64: 50, 192>}, {pipeline_mode = #tpu.pipeline_mode<synchronous>, transform_indices = @transform_2, window_bounds = array<i64: 50, 1>}, {pipeline_mode = #tpu.pipeline_mode<synchronous>, transform_indices = @transform_3, window_bounds = array<i64: 50, 12>}, {pipeline_mode = #tpu.pipeline_mode<synchronous>, transform_indices = @transform_4, window_bounds = array<i64: 50, 1>}, {pipeline_mode = #tpu.pipeline_mode<synchronous>, transform_indices = @transform_5, window_bounds = array<i64: 9, 50>}, {pipeline_mode = #tpu.pipeline_mode<synchronous>, transform_indices = @transform_6, window_bounds = array<i64: 9, 50>}, {pipeline_mode = #tpu.pipeline_mode<synchronous>, transform_indices = @transform_7, window_bounds = array<i64: 9, 1>}, {transform_indices = @transform_8, window_bounds = array<i64: 9, 256>}]} {
    %c0 = arith.constant 0 : index
    %c0_0 = arith.constant 0 : index
    %0 = vector.load %arg1[%c0, %c0_0] : memref<15x256xi32, #tpu.memory_space<vmem>>, vector<15x256xi32>
    %1 = vector.extract_strided_slice %0 {offsets = [0, 0], sizes = [1, 256], strides = [1, 1]} : vector<15x256xi32> to vector<1x256xi32>
    %2 = vector.extract_strided_slice %0 {offsets = [1, 0], sizes = [1, 256], strides = [1, 1]} : vector<15x256xi32> to vector<1x256xi32>
    %3 = vector.extract_strided_slice %0 {offsets = [2, 0], sizes = [1, 256], strides = [1, 1]} : vector<15x256xi32> to vector<1x256xi32>
    %4 = vector.extract_strided_slice %0 {offsets = [3, 0], sizes = [12, 256], strides = [1, 1]} : vector<15x256xi32> to vector<12x256xi32>
    %5 = arith.sitofp %4 : vector<12x256xi32> to vector<12x256xf32>
    %6 = tpu.iota {dimensions = array<i32: 0>} : vector<192x256xi32>
    %7 = vector.broadcast %1 : vector<1x256xi32> to vector<192x256xi32>
    %8 = arith.cmpi eq, %6, %7 : vector<192x256xi32>
    %c64_i32 = arith.constant 64 : i32
    %9 = vector.broadcast %c64_i32 : i32 to vector<1x256xi32>
    %10 = arith.addi %2, %9 : vector<1x256xi32>
    %11 = vector.broadcast %10 : vector<1x256xi32> to vector<192x256xi32>
    %12 = arith.cmpi eq, %6, %11 : vector<192x256xi32>
    %13 = arith.ori %8, %12 : vector<192x256xi1>
    %c128_i32 = arith.constant 128 : i32
    %14 = vector.broadcast %c128_i32 : i32 to vector<1x256xi32>
    %15 = arith.addi %3, %14 : vector<1x256xi32>
    %16 = vector.broadcast %15 : vector<1x256xi32> to vector<192x256xi32>
    %17 = arith.cmpi eq, %6, %16 : vector<192x256xi32>
    %18 = arith.ori %13, %17 : vector<192x256xi1>
    %19 = arith.extui %18 : vector<192x256xi1> to vector<192x256xi32>
    %20 = arith.sitofp %19 : vector<192x256xi32> to vector<192x256xf32>
    %c0_1 = arith.constant 0 : index
    %c0_2 = arith.constant 0 : index
    %21 = vector.load %arg2[%c0_1, %c0_2] : memref<50x192xf32, #tpu.memory_space<vmem>>, vector<50x192xf32>
    %cst = arith.constant dense<0.000000e+00> : vector<50x256xf32>
    %22 = tpu.matmul %21, %20, %cst {dimension_numbers = #tpu.dot_dimension_numbers<[1], [0], [0], [1], [0, 0, 1, 1], [], []>} : vector<50x192xf32>, vector<192x256xf32>, vector<50x256xf32> -> vector<50x256xf32>
    %c0_3 = arith.constant 0 : index
    %c0_4 = arith.constant 0 : index
    %23 = vector.load %arg3[%c0_3, %c0_4] : memref<50x1xf32, #tpu.memory_space<vmem>>, vector<50x1xf32>
    %24 = vector.broadcast %23 : vector<50x1xf32> to vector<50x256xf32>
    %25 = arith.addf %22, %24 : vector<50x256xf32>
    %cst_5 = arith.constant 0.000000e+00 : f32
    %26 = vector.broadcast %cst_5 : f32 to vector<50x256xf32>
    %27 = arith.maximumf %25, %26 : vector<50x256xf32>
    %c0_6 = arith.constant 0 : index
    %c0_7 = arith.constant 0 : index
    %28 = vector.load %arg4[%c0_6, %c0_7] : memref<50x12xf32, #tpu.memory_space<vmem>>, vector<50x12xf32>
    %cst_8 = arith.constant dense<0.000000e+00> : vector<50x256xf32>
    %29 = tpu.matmul %28, %5, %cst_8 {dimension_numbers = #tpu.dot_dimension_numbers<[1], [0], [0], [1], [0, 0, 1, 1], [], []>} : vector<50x12xf32>, vector<12x256xf32>, vector<50x256xf32> -> vector<50x256xf32>
    %c0_9 = arith.constant 0 : index
    %c0_10 = arith.constant 0 : index
    %30 = vector.load %arg5[%c0_9, %c0_10] : memref<50x1xf32, #tpu.memory_space<vmem>>, vector<50x1xf32>
    %31 = vector.broadcast %30 : vector<50x1xf32> to vector<50x256xf32>
    %32 = arith.addf %29, %31 : vector<50x256xf32>
    %cst_11 = arith.constant 0.000000e+00 : f32
    %33 = vector.broadcast %cst_11 : f32 to vector<50x256xf32>
    %34 = arith.maximumf %32, %33 : vector<50x256xf32>
    %c0_12 = arith.constant 0 : index
    %c0_13 = arith.constant 0 : index
    %35 = vector.load %arg6[%c0_12, %c0_13] : memref<9x50xf32, #tpu.memory_space<vmem>>, vector<9x50xf32>
    %cst_14 = arith.constant dense<0.000000e+00> : vector<9x256xf32>
    %36 = tpu.matmul %35, %27, %cst_14 {dimension_numbers = #tpu.dot_dimension_numbers<[1], [0], [0], [1], [0, 0, 1, 1], [], []>} : vector<9x50xf32>, vector<50x256xf32>, vector<9x256xf32> -> vector<9x256xf32>
    %c0_15 = arith.constant 0 : index
    %c0_16 = arith.constant 0 : index
    %37 = vector.load %arg7[%c0_15, %c0_16] : memref<9x50xf32, #tpu.memory_space<vmem>>, vector<9x50xf32>
    %cst_17 = arith.constant dense<0.000000e+00> : vector<9x256xf32>
    %38 = tpu.matmul %37, %34, %cst_17 {dimension_numbers = #tpu.dot_dimension_numbers<[1], [0], [0], [1], [0, 0, 1, 1], [], []>} : vector<9x50xf32>, vector<50x256xf32>, vector<9x256xf32> -> vector<9x256xf32>
    %39 = arith.addf %36, %38 : vector<9x256xf32>
    %c0_18 = arith.constant 0 : index
    %c0_19 = arith.constant 0 : index
    %40 = vector.load %arg8[%c0_18, %c0_19] : memref<9x1xf32, #tpu.memory_space<vmem>>, vector<9x1xf32>
    %41 = vector.broadcast %40 : vector<9x1xf32> to vector<9x256xf32>
    %42 = arith.addf %39, %41 : vector<9x256xf32>
    %cst_20 = arith.constant dense<0xFF800000> : vector<256xf32>
    %43 = vector.multi_reduction <maximumf>, %42, %cst_20 [0] : vector<9x256xf32> to vector<256xf32>
    %44 = vector.shape_cast %43 : vector<256xf32> to vector<1x256xf32>
    %45 = vector.broadcast %44 : vector<1x256xf32> to vector<9x256xf32>
    %46 = arith.subf %42, %45 : vector<9x256xf32>
    %47 = math.exp %46 : vector<9x256xf32>
    %cst_21 = arith.constant dense<0.000000e+00> : vector<256xf32>
    %48 = vector.multi_reduction <add>, %47, %cst_21 [0] : vector<9x256xf32> to vector<256xf32>
    %49 = vector.shape_cast %48 : vector<256xf32> to vector<1x256xf32>
    %50 = math.log %49 : vector<1x256xf32>
    %51 = vector.broadcast %50 : vector<1x256xf32> to vector<9x256xf32>
    %52 = arith.subf %46, %51 : vector<9x256xf32>
    %c0_22 = arith.constant 0 : index
    %c0_23 = arith.constant 0 : index
    %53 = vector.load %arg9[%c0_22, %c0_23] : memref<9x256xf32, #tpu.memory_space<vmem>>, vector<9x256xf32>
    tpu.vector_store %arg9[%c0_22, %c0_23], %52 {strides = array<i32>} : memref<9x256xf32, #tpu.memory_space<vmem>>, vector<9x256xf32>,
    return
  }
  func.func @transform_0(%arg0: i32) -> (i32, i32) {
    %c0_i32 = arith.constant 0 : i32
    %c0_i32_0 = arith.constant 0 : i32
    return %c0_i32, %arg0 : i32, i32
  }
  func.func @transform_1(%arg0: i32) -> (i32, i32) {
    %c0_i32 = arith.constant 0 : i32
    %c0_i32_0 = arith.constant 0 : i32
    %c0_i32_1 = arith.constant 0 : i32
    return %c0_i32, %c0_i32_0 : i32, i32
  }
  func.func @transform_2(%arg0: i32) -> (i32, i32) {
    %c0_i32 = arith.constant 0 : i32
    %c0_i32_0 = arith.constant 0 : i32
    %c0_i32_1 = arith.constant 0 : i32
    return %c0_i32, %c0_i32_0 : i32, i32
  }
  func.func @transform_3(%arg0: i32) -> (i32, i32) {
    %c0_i32 = arith.constant 0 : i32
    %c0_i32_0 = arith.constant 0 : i32
    %c0_i32_1 = arith.constant 0 : i32
    return %c0_i32, %c0_i32_0 : i32, i32
  }
  func.func @transform_4(%arg0: i32) -> (i32, i32) {
    %c0_i32 = arith.constant 0 : i32
    %c0_i32_0 = arith.constant 0 : i32
    %c0_i32_1 = arith.constant 0 : i32
    return %c0_i32, %c0_i32_0 : i32, i32
  }
  func.func @transform_5(%arg0: i32) -> (i32, i32) {
    %c0_i32 = arith.constant 0 : i32
    %c0_i32_0 = arith.constant 0 : i32
    %c0_i32_1 = arith.constant 0 : i32
    return %c0_i32, %c0_i32_0 : i32, i32
  }
  func.func @transform_6(%arg0: i32) -> (i32, i32) {
    %c0_i32 = arith.constant 0 : i32
    %c0_i32_0 = arith.constant 0 : i32
    %c0_i32_1 = arith.constant 0 : i32
    return %c0_i32, %c0_i32_0 : i32, i32
  }
  func.func @transform_7(%arg0: i32) -> (i32, i32) {
    %c0_i32 = arith.constant 0 : i32
    %c0_i32_0 = arith.constant 0 : i32
    %c0_i32_1 = arith.constant 0 : i32
    return %c0_i32, %c0_i32_0 : i32, i32
  }
  func.func @transform_8(%arg0: i32) -> (i32, i32) {
    %c0_i32 = arith.constant 0 : i32
    %c0_i32_0 = arith.constant 0 : i32
    return %c0_i32, %arg0 : i32, i32
  }
}

</mosaic_0001>

<llo_original>
// kernel: tpu_custom_call.1
$region0: #{tpu_custom_call.1}
  #allocation0 [shape = 'u32[]', space=smem, size = 0x4, offset = 0x4, fixed_abs, tag = 'smem constant byte address 0x4 - core index']
  #allocation1 [shape = 'u32[144,128]{1,0:T(1,128)}', space=vmem, size = 0x12000, scoped, tag = 'internal scratch']
  %s0 = inlined_call_operand.vmem [shape: s32[15,300], index: 0, kind: input, shape index: {}]
  %s1 = inlined_call_operand.vmem [shape: f32[50,192], index: 1, kind: input, shape index: {}]
  %s2 = inlined_call_operand.vmem [shape: f32[50,1], index: 2, kind: input, shape index: {}]
  %s3 = inlined_call_operand.vmem [shape: f32[50,12], index: 3, kind: input, shape index: {}]
  %s4 = inlined_call_operand.vmem [shape: f32[50,1], index: 4, kind: input, shape index: {}]
  %s5 = inlined_call_operand.vmem [shape: f32[9,50], index: 5, kind: input, shape index: {}]
  %s6 = inlined_call_operand.vmem [shape: f32[9,50], index: 6, kind: input, shape index: {}]
  %s7 = inlined_call_operand.vmem [shape: f32[9,1], index: 7, kind: input, shape index: {}]
  %s8 = inlined_call_operand.hbm [shape: f32[9,300], index: 8, kind: output, shape index: {}]
  %s9 = sld [smem:[#allocation0]]
  $region131: #{tpu_custom_call.1} parent=0
    _
  %s11 = ssub.s32 1, %s9
  %s12 = scalar_select 0, %s11, %s9
  $region1: #{tpu_custom_call.1} parent=0
    #allocation2 [shape = 'u8[32768]{0}', space=vmem, size = 0x8000, scoped, tag = 'input window, operand 0']
    #allocation3 [shape = 'u8[32768]{0}', space=vmem, size = 0x8000, scoped, tag = 'output window, operand 0']
    #allocation4 [shape = 's32[2]{0}', space=sflag, size = 0x8, scoped, tag = 'scoped memory for tpu_custom_call.1']
    %13 = vsyncpa [#allocation4], 0
    %s14 = scalar_lea.sflag [#allocation4], 1
    %15 = vsyncpa %s14, 0
    loop: start=0, step=1, limit=4
    $region2: #{tpu_custom_call.1} parent=1 // loop_pre_header
      _
    $region3: #{tpu_custom_call.1} parent=1 // loop_header
      %s17 = sphi 0, %s21
      %p18 = scmp.ge.s32.totalorder %s17, 4
      %s27 = sphi 0, %s29
      %s30 = sphi 0, %s27
      %s31 = sphi 0, %s30
      %s47 = sphi 0, %s31
      %s51 = sphi 0, %s51
      %s53 = sphi 0, %s51
      %s54 = sphi 0, %s53
      %s68 = sphi 0, %s54
      %s72 = sphi 0, %s72
      %s74 = sphi 0, %s72
      %s75 = sphi 0, %s74
      %s89 = sphi 0, %s75
      %s93 = sphi 0, %s93
      %s95 = sphi 0, %s93
      %s96 = sphi 0, %s95
      %s110 = sphi 0, %s96
      %s114 = sphi 0, %s114
      %s116 = sphi 0, %s114
      %s117 = sphi 0, %s116
      %s131 = sphi 0, %s117
      %s135 = sphi 0, %s135
      %s137 = sphi 0, %s135
      %s138 = sphi 0, %s137
      %s152 = sphi 0, %s138
      %s156 = sphi 0, %s156
      %s158 = sphi 0, %s156
      %s159 = sphi 0, %s158
      %s173 = sphi 0, %s159
      %s177 = sphi 0, %s177
      %s179 = sphi 0, %s177
      %s180 = sphi 0, %s179
      %s194 = sphi 0, %s180
      %s200 = sphi 0, %s202
      %s203 = sphi 0, %s200
      %s204 = sphi 0, %s203
      %s220 = sphi 0, %s204
    $region4: #{tpu_custom_call.1} parent=1 // loop_header_branch
      %20 = sbr.rel (%p18) target = $region8
    $region5: #{tpu_custom_call.1} parent=1 // loop_body
      %s22 = ssub.s32 %s17, 1
      %s23 = ssub.s32 %s17, 2
      %s24 = sadd.s32 %s17, 1
      %s25 = ssub.s32 %s17, %s24
      %p26 = scmp.eq.s32.totalorder %s25, 0
      %s28 = sadd.s32 %s27, 1
      %s29 = scalar_select %p26, %s27, %s28
      %p32 = pneg %p26
      %p33 = scmp.eq.s32.totalorder %s17, 1
      %p34 = por %p32, %p33
      %p35 = scmp.ne.s32.totalorder %s27, %s30
      %p36 = scmp.eq.s32.totalorder %s17, 0
      %p37 = por %p35, %p36
      %p38 = scmp.ne.s32.totalorder %s27, %s30
      %p39 = scmp.eq.s32.totalorder %s22, 1
      %p40 = por %p38, %p39
      %p41 = scmp.ne.s32.totalorder %s30, %s31
      %p42 = scmp.eq.s32.totalorder %s22, 0
      %p43 = por %p41, %p42
      %p44 = scmp.ne.s32.totalorder %s30, %s31
      %p45 = scmp.eq.s32.totalorder %s23, 1
      %p46 = por %p44, %p45
      %p48 = scmp.ne.s32.totalorder %s31, %s47
      %p49 = scmp.eq.s32.totalorder %s23, 0
      %p50 = por %p48, %p49
      %s52 = sadd.s32 %s51, 1
      %p55 = scmp.eq.s32.totalorder %s17, 1
      %p56 = scmp.ne.s32.totalorder %s51, %s53
      %p57 = scmp.eq.s32.totalorder %s17, 0
      %p58 = por %p56, %p57
      %p59 = scmp.ne.s32.totalorder %s51, %s53
      %p60 = scmp.eq.s32.totalorder %s22, 1
      %p61 = por %p59, %p60
      %p62 = scmp.ne.s32.totalorder %s53, %s54
      %p63 = scmp.eq.s32.totalorder %s22, 0
      %p64 = por %p62, %p63
      %p65 = scmp.ne.s32.totalorder %s53, %s54
      %p66 = scmp.eq.s32.totalorder %s23, 1
      %p67 = por %p65, %p66
      %p69 = scmp.ne.s32.totalorder %s54, %s68
      %p70 = scmp.eq.s32.totalorder %s23, 0
      %p71 = por %p69, %p70
      %s73 = sadd.s32 %s72, 1
      %p76 = scmp.eq.s32.totalorder %s17, 1
      %p77 = scmp.ne.s32.totalorder %s72, %s74
      %p78 = scmp.eq.s32.totalorder %s17, 0
      %p79 = por %p77, %p78
      %p80 = scmp.ne.s32.totalorder %s72, %s74
      %p81 = scmp.eq.s32.totalorder %s22, 1
      %p82 = por %p80, %p81
      %p83 = scmp.ne.s32.totalorder %s74, %s75
      %p84 = scmp.eq.s32.totalorder %s22, 0
      %p85 = por %p83, %p84
      %p86 = scmp.ne.s32.totalorder %s74, %s75
      %p87 = scmp.eq.s32.totalorder %s23, 1
      %p88 = por %p86, %p87
      %p90 = scmp.ne.s32.totalorder %s75, %s89
      %p91 = scmp.eq.s32.totalorder %s23, 0
      %p92 = por %p90, %p91
      %s94 = sadd.s32 %s93, 1
      %p97 = scmp.eq.s32.totalorder %s17, 1
      %p98 = scmp.ne.s32.totalorder %s93, %s95
      %p99 = scmp.eq.s32.totalorder %s17, 0
      %p100 = por %p98, %p99
      %p101 = scmp.ne.s32.totalorder %s93, %s95
      %p102 = scmp.eq.s32.totalorder %s22, 1
      %p103 = por %p101, %p102
      %p104 = scmp.ne.s32.totalorder %s95, %s96
      %p105 = scmp.eq.s32.totalorder %s22, 0
      %p106 = por %p104, %p105
      %p107 = scmp.ne.s32.totalorder %s95, %s96
      %p108 = scmp.eq.s32.totalorder %s23, 1
      %p109 = por %p107, %p108
      %p111 = scmp.ne.s32.totalorder %s96, %s110
      %p112 = scmp.eq.s32.totalorder %s23, 0
      %p113 = por %p111, %p112
      %s115 = sadd.s32 %s114, 1
      %p118 = scmp.eq.s32.totalorder %s17, 1
      %p119 = scmp.ne.s32.totalorder %s114, %s116
      %p120 = scmp.eq.s32.totalorder %s17, 0
      %p121 = por %p119, %p120
      %p122 = scmp.ne.s32.totalorder %s114, %s116
      %p123 = scmp.eq.s32.totalorder %s22, 1
      %p124 = por %p122, %p123
      %p125 = scmp.ne.s32.totalorder %s116, %s117
      %p126 = scmp.eq.s32.totalorder %s22, 0
      %p127 = por %p125, %p126
      %p128 = scmp.ne.s32.totalorder %s116, %s117
      %p129 = scmp.eq.s32.totalorder %s23, 1
      %p130 = por %p128, %p129
      %p132 = scmp.ne.s32.totalorder %s117, %s131
      %p133 = scmp.eq.s32.totalorder %s23, 0
      %p134 = por %p132, %p133
      %s136 = sadd.s32 %s135, 1
      %p139 = scmp.eq.s32.totalorder %s17, 1
      %p140 = scmp.ne.s32.totalorder %s135, %s137
      %p141 = scmp.eq.s32.totalorder %s17, 0
      %p142 = por %p140, %p141
      %p143 = scmp.ne.s32.totalorder %s135, %s137
      %p144 = scmp.eq.s32.totalorder %s22, 1
      %p145 = por %p143, %p144
      %p146 = scmp.ne.s32.totalorder %s137, %s138
      %p147 = scmp.eq.s32.totalorder %s22, 0
      %p148 = por %p146, %p147
      %p149 = scmp.ne.s32.totalorder %s137, %s138
      %p150 = scmp.eq.s32.totalorder %s23, 1
      %p151 = por %p149, %p150
      %p153 = scmp.ne.s32.totalorder %s138, %s152
      %p154 = scmp.eq.s32.totalorder %s23, 0
      %p155 = por %p153, %p154
      %s157 = sadd.s32 %s156, 1
      %p160 = scmp.eq.s32.totalorder %s17, 1
      %p161 = scmp.ne.s32.totalorder %s156, %s158
      %p162 = scmp.eq.s32.totalorder %s17, 0
      %p163 = por %p161, %p162
      %p164 = scmp.ne.s32.totalorder %s156, %s158
      %p165 = scmp.eq.s32.totalorder %s22, 1
      %p166 = por %p164, %p165
      %p167 = scmp.ne.s32.totalorder %s158, %s159
      %p168 = scmp.eq.s32.totalorder %s22, 0
      %p169 = por %p167, %p168
      %p170 = scmp.ne.s32.totalorder %s158, %s159
      %p171 = scmp.eq.s32.totalorder %s23, 1
      %p172 = por %p170, %p171
      %p174 = scmp.ne.s32.totalorder %s159, %s173
      %p175 = scmp.eq.s32.totalorder %s23, 0
      %p176 = por %p174, %p175
      %s178 = sadd.s32 %s177, 1
      %p181 = scmp.eq.s32.totalorder %s17, 1
      %p182 = scmp.ne.s32.totalorder %s177, %s179
      %p183 = scmp.eq.s32.totalorder %s17, 0
      %p184 = por %p182, %p183
      %p185 = scmp.ne.s32.totalorder %s177, %s179
      %p186 = scmp.eq.s32.totalorder %s22, 1
      %p187 = por %p185, %p186
      %p188 = scmp.ne.s32.totalorder %s179, %s180
      %p189 = scmp.eq.s32.totalorder %s22, 0
      %p190 = por %p188, %p189
      %p191 = scmp.ne.s32.totalorder %s179, %s180
      %p192 = scmp.eq.s32.totalorder %s23, 1
      %p193 = por %p191, %p192
      %p195 = scmp.ne.s32.totalorder %s180, %s194
      %p196 = scmp.eq.s32.totalorder %s23, 0
      %p197 = por %p195, %p196
      %s198 = ssub.s32 %s17, %s24
      %p199 = scmp.eq.s32.totalorder %s198, 0
      %s201 = sadd.s32 %s200, 1
      %s202 = scalar_select %p199, %s200, %s201
      %p205 = pneg %p199
      %p206 = scmp.eq.s32.totalorder %s17, 1
      %p207 = por %p205, %p206
      %p208 = scmp.ne.s32.totalorder %s200, %s203
      %p209 = scmp.eq.s32.totalorder %s17, 0
      %p210 = por %p208, %p209
      %p211 = scmp.ne.s32.totalorder %s200, %s203
      %p212 = scmp.eq.s32.totalorder %s22, 1
      %p213 = por %p211, %p212
      %p214 = scmp.ne.s32.totalorder %s203, %s204
      %p215 = scmp.eq.s32.totalorder %s22, 0
      %p216 = por %p214, %p215
      %p217 = scmp.ne.s32.totalorder %s203, %s204
      %p218 = scmp.eq.s32.totalorder %s23, 1
      %p219 = por %p217, %p218
      %p221 = scmp.ne.s32.totalorder %s204, %s220
      %p222 = scmp.eq.s32.totalorder %s23, 0
      %p223 = por %p221, %p222
      %p224 = scmp.le.s32.totalorder 1, %s17
      %p225 = scmp.lt.s32.totalorder %s17, 3
      %p226 = pnand %p224, %p225
      %p227 = pneg %p226
      // Predicated region
      $region9: #{tpu_custom_call.1} parent=5 // pred_check
        _
      $region10: #{tpu_custom_call.1} parent=5 // pred_check_branch
        %229 = sbr.rel (%p226) target = $region12
      $region11: #{tpu_custom_call.1} parent=5 // pred_region
        %s230 = ssub.s32 %s17, 1
        // Predicated region
        $region13: #{tpu_custom_call.1} parent=11 // pred_check
          %p231 = pneg %p64
        $region14: #{tpu_custom_call.1} parent=11 // pred_check_branch
          %233 = sbr.rel (%p231) target = $region16
        $region15: #{tpu_custom_call.1} parent=11 // pred_region
          _
        $region16: #{tpu_custom_call.1} parent=11 // pred_fallthru
          _
        // Predicated region
        $region17: #{tpu_custom_call.1} parent=11 // pred_check
          %p234 = pneg %p85
        $region18: #{tpu_custom_call.1} parent=11 // pred_check_branch
          %236 = sbr.rel (%p234) target = $region20
        $region19: #{tpu_custom_call.1} parent=11 // pred_region
          _
        $region20: #{tpu_custom_call.1} parent=11 // pred_fallthru
          _
        // Predicated region
        $region21: #{tpu_custom_call.1} parent=11 // pred_check
          %p237 = pneg %p106
        $region22: #{tpu_custom_call.1} parent=11 // pred_check_branch
          %239 = sbr.rel (%p237) target = $region24
        $region23: #{tpu_custom_call.1} parent=11 // pred_region
          _
        $region24: #{tpu_custom_call.1} parent=11 // pred_fallthru
          _
        // Predicated region
        $region25: #{tpu_custom_call.1} parent=11 // pred_check
          %p240 = pneg %p127
        $region26: #{tpu_custom_call.1} parent=11 // pred_check_branch
          %242 = sbr.rel (%p240) target = $region28
        $region27: #{tpu_custom_call.1} parent=11 // pred_region
          _
        $region28: #{tpu_custom_call.1} parent=11 // pred_fallthru
          _
        // Predicated region
        $region29: #{tpu_custom_call.1} parent=11 // pred_check
          %p243 = pneg %p148
        $region30: #{tpu_custom_call.1} parent=11 // pred_check_branch
          %245 = sbr.rel (%p243) target = $region32
        $region31: #{tpu_custom_call.1} parent=11 // pred_region
          _
        $region32: #{tpu_custom_call.1} parent=11 // pred_fallthru
          _
        // Predicated region
        $region33: #{tpu_custom_call.1} parent=11 // pred_check
          %p246 = pneg %p169
        $region34: #{tpu_custom_call.1} parent=11 // pred_check_branch
          %248 = sbr.rel (%p246) target = $region36
        $region35: #{tpu_custom_call.1} parent=11 // pred_region
          _
        $region36: #{tpu_custom_call.1} parent=11 // pred_fallthru
          _
        // Predicated region
        $region37: #{tpu_custom_call.1} parent=11 // pred_check
          %p249 = pneg %p190
        $region38: #{tpu_custom_call.1} parent=11 // pred_check_branch
          %251 = sbr.rel (%p249) target = $region40
        $region39: #{tpu_custom_call.1} parent=11 // pred_region
          _
        $region40: #{tpu_custom_call.1} parent=11 // pred_fallthru
          _
      $region12: #{tpu_custom_call.1} parent=5 // pred_fallthru
        _
      %p252 = scmp.lt.s32.totalorder %s17, 2
      // Predicated region
      $region41: #{tpu_custom_call.1} parent=5 // pred_check
        %p253 = pneg %p252
      $region42: #{tpu_custom_call.1} parent=5 // pred_check_branch
        %255 = sbr.rel (%p253) target = $region44
      $region43: #{tpu_custom_call.1} parent=5 // pred_region
        // Predicated region
        $region45: #{tpu_custom_call.1} parent=43 // pred_check
          %p256 = pneg %p37
        $region46: #{tpu_custom_call.1} parent=43 // pred_check_branch
          %258 = sbr.rel (%p256) target = $region48
        $region47: #{tpu_custom_call.1} parent=43 // pred_region
          %s259 = sand.u32 %s27, 1
          %s260 = sand.u32 %s27, 1
          %s261 = smul.addr %s260, 32
          %s262 = scalar_lea.vmem [#allocation2], %s261
          %s263 = smul.u32 2, %s17
          %s264 = ssub.s32 3, %s263
          %p265 = scmp.lt.s32.totalorder %s264, 2
          %s266 = scalar_select %p265, %s264, 2
          %s267 = smul.u32 256, %s266
          %p268 = scmp.ne.s32.totalorder 0, %s267
          %s269 = smul.addr %s263, 8
          %s270 = scalar_lea.vmem %s0, %s269
          %s271 = smul.u32 %s266, 8
          // Predicated region
          $region49: #{tpu_custom_call.1} parent=47 // pred_check
            %p272 = pneg %p268
          $region50: #{tpu_custom_call.1} parent=47 // pred_check_branch
            %274 = sbr.rel (%p272) target = $region52
          $region51: #{tpu_custom_call.1} parent=47 // pred_region
            %p275 = scmp.lt.u32.totalorder %s271, 8
            %p276 = pneg %p275
            // Predicated region
            $region53: #{tpu_custom_call.1} parent=51 // pred_check
              _
            $region54: #{tpu_custom_call.1} parent=51 // pred_check_branch
              %278 = sbr.rel (%p275) target = $region56
            $region55: #{tpu_custom_call.1} parent=51 // pred_region
              %s296 = sand.u32 %s271, 7
              %p297 = scmp.eq.s32.totalorder %s296, 0
              // Predicated region
              $region68: #{tpu_custom_call.1} parent=55 // pred_check
                %p298 = pneg %p297
              $region69: #{tpu_custom_call.1} parent=55 // pred_check_branch
                %300 = sbr.rel (%p298) target = $region71
              $region70: #{tpu_custom_call.1} parent=55 // pred_region
                %s301 = sshrl.u32 %s271, 3
                %s302 = sshrl.u32 %s301, 5
                // While loop
                $region72: #{tpu_custom_call.1} parent=70 // loop_pre_header
                  _
                $region73: #{tpu_custom_call.1} parent=70 // loop_header
                  %s306 = sphi 0, %s308
                  %p307 = scmp.ge.s32.totalorder %s306, %s302
                  %s311 = sphi 0, %s444
                  %s312 = sphi %s270, %s447
                  %s313 = sphi %s262, %s448
                $region74: #{tpu_custom_call.1} parent=70 // loop_header_branch
                  %310 = sbr.rel (%p307) target = $region78
                $region75: #{tpu_custom_call.1} parent=70 // loop_body
                  %v314 = vld [vmem:[%s312] sm:$0xff]
                  %315 = vst [vmem:[%s313] sm:$0xff] %v314
                  %v316 = vld [vmem:[%s312 + $0x8] sm:$0xff]
                  %317 = vst [vmem:[%s313 + $0x8] sm:$0xff] %v316
                  %v318 = vld [vmem:[%s312 + $0x10] sm:$0xff]
                  %319 = vst [vmem:[%s313 + $0x10] sm:$0xff] %v318
                  %v320 = vld [vmem:[%s312 + $0x18] sm:$0xff]
                  %321 = vst [vmem:[%s313 + $0x18] sm:$0xff] %v320
                  %v322 = vld [vmem:[%s312 + $0x20] sm:$0xff]
                  %323 = vst [vmem:[%s313 + $0x20] sm:$0xff] %v322
                  %v324 = vld [vmem:[%s312 + $0x28] sm:$0xff]
                  %325 = vst [vmem:[%s313 + $0x28] sm:$0xff] %v324
                  %v326 = vld [vmem:[%s312 + $0x30] sm:$0xff]
                  %327 = vst [vmem:[%s313 + $0x30] sm:$0xff] %v326
                  %v328 = vld [vmem:[%s312 + $0x38] sm:$0xff]
                  %329 = vst [vmem:[%s313 + $0x38] sm:$0xff] %v328
                  %v330 = vld [vmem:[%s312 + $0x40] sm:$0xff]
                  %331 = vst [vmem:[%s313 + $0x40] sm:$0xff] %v330
                  %v332 = vld [vmem:[%s312 + $0x48] sm:$0xff]
                  %333 = vst [vmem:[%s313 + $0x48] sm:$0xff] %v332
                  %v334 = vld [vmem:[%s312 + $0x50] sm:$0xff]
                  %335 = vst [vmem:[%s313 + $0x50] sm:$0xff] %v334
                  %v336 = vld [vmem:[%s312 + $0x58] sm:$0xff]
                  %337 = vst [vmem:[%s313 + $0x58] sm:$0xff] %v336
                  %v338 = vld [vmem:[%s312 + $0x60] sm:$0xff]
                  %339 = vst [vmem:[%s313 + $0x60] sm:$0xff] %v338
                  %v340 = vld [vmem:[%s312 + $0x68] sm:$0xff]
                  %341 = vst [vmem:[%s313 + $0x68] sm:$0xff] %v340
                  %v342 = vld [vmem:[%s312 + $0x70] sm:$0xff]
                  %343 = vst [vmem:[%s313 + $0x70] sm:$0xff] %v342
                  %v344 = vld [vmem:[%s312 + $0x78] sm:$0xff]
                  %345 = vst [vmem:[%s313 + $0x78] sm:$0xff] %v344
                  %v346 = vld [vmem:[%s312 + $0x80] sm:$0xff]
                  %347 = vst [vmem:[%s313 + $0x80] sm:$0xff] %v346
                  %v348 = vld [vmem:[%s312 + $0x88] sm:$0xff]
                  %349 = vst [vmem:[%s313 + $0x88] sm:$0xff] %v348
                  %v350 = vld [vmem:[%s312 + $0x90] sm:$0xff]
                  %351 = vst [vmem:[%s313 + $0x90] sm:$0xff] %v350
                  %v352 = vld [vmem:[%s312 + $0x98] sm:$0xff]
                  %353 = vst [vmem:[%s313 + $0x98] sm:$0xff] %v352
                  %v354 = vld [vmem:[%s312 + $0xa0] sm:$0xff]
                  %355 = vst [vmem:[%s313 + $0xa0] sm:$0xff] %v354
                  %v356 = vld [vmem:[%s312 + $0xa8] sm:$0xff]
                  %357 = vst [vmem:[%s313 + $0xa8] sm:$0xff] %v356
                  %v358 = vld [vmem:[%s312 + $0xb0] sm:$0xff]
                  %359 = vst [vmem:[%s313 + $0xb0] sm:$0xff] %v358
                  %v360 = vld [vmem:[%s312 + $0xb8] sm:$0xff]
                  %361 = vst [vmem:[%s313 + $0xb8] sm:$0xff] %v360
                  %v362 = vld [vmem:[%s312 + $0xc0] sm:$0xff]
                  %363 = vst [vmem:[%s313 + $0xc0] sm:$0xff] %v362
                  %v364 = vld [vmem:[%s312 + $0xc8] sm:$0xff]
                  %365 = vst [vmem:[%s313 + $0xc8] sm:$0xff] %v364
                  %v366 = vld [vmem:[%s312 + $0xd0] sm:$0xff]
                  %367 = vst [vmem:[%s313 + $0xd0] sm:$0xff] %v366
                  %v368 = vld [vmem:[%s312 + $0xd8] sm:$0xff]
                  %369 = vst [vmem:[%s313 + $0xd8] sm:$0xff] %v368
                  %v370 = vld [vmem:[%s312 + $0xe0] sm:$0xff]
                  %371 = vst [vmem:[%s313 + $0xe0] sm:$0xff] %v370
                  %v372 = vld [vmem:[%s312 + $0xe8] sm:$0xff]
                  %373 = vst [vmem:[%s313 + $0xe8] sm:$0xff] %v372
                  %v374 = vld [vmem:[%s312 + $0xf0] sm:$0xff]
                  %375 = vst [vmem:[%s313 + $0xf0] sm:$0xff] %v374
                  %v376 = vld [vmem:[%s312 + $0xf8] sm:$0xff]
                  %377 = vst [vmem:[%s313 + $0xf8] sm:$0xff] %v376
                  %v378 = vld [vmem:[%s312 + $0x18] sm:$0xff]
                  %379 = vst [vmem:[%s313 + $0x10] sm:$0xff] %v378
                  %v380 = vld [vmem:[%s312 + $0x20] sm:$0xff]
                  %381 = vst [vmem:[%s313 + $0x18] sm:$0xff] %v380
                  %v382 = vld [vmem:[%s312 + $0x28] sm:$0xff]
                  %383 = vst [vmem:[%s313 + $0x20] sm:$0xff] %v382
                  %v384 = vld [vmem:[%s312 + $0x30] sm:$0xff]
                  %385 = vst [vmem:[%s313 + $0x28] sm:$0xff] %v384
                  %v386 = vld [vmem:[%s312 + $0x38] sm:$0xff]
                  %387 = vst [vmem:[%s313 + $0x30] sm:$0xff] %v386
                  %v388 = vld [vmem:[%s312 + $0x40] sm:$0xff]
                  %389 = vst [vmem:[%s313 + $0x38] sm:$0xff] %v388
                  %v390 = vld [vmem:[%s312 + $0x48] sm:$0xff]
                  %391 = vst [vmem:[%s313 + $0x40] sm:$0xff] %v390
                  %v392 = vld [vmem:[%s312 + $0x50] sm:$0xff]
                  %393 = vst [vmem:[%s313 + $0x48] sm:$0xff] %v392
                  %v394 = vld [vmem:[%s312 + $0x58] sm:$0xff]
                  %395 = vst [vmem:[%s313 + $0x50] sm:$0xff] %v394
                  %v396 = vld [vmem:[%s312 + $0x60] sm:$0xff]
                  %397 = vst [vmem:[%s313 + $0x58] sm:$0xff] %v396
                  %v398 = vld [vmem:[%s312 + $0x68] sm:$0xff]
                  %399 = vst [vmem:[%s313 + $0x60] sm:$0xff] %v398
                  %v400 = vld [vmem:[%s312 + $0x70] sm:$0xff]
                  %401 = vst [vmem:[%s313 + $0x68] sm:$0xff] %v400
                  %v402 = vld [vmem:[%s312 + $0x78] sm:$0xff]
                  %403 = vst [vmem:[%s313 + $0x70] sm:$0xff] %v402
                  %v404 = vld [vmem:[%s312 + $0x80] sm:$0xff]
                  %405 = vst [vmem:[%s313 + $0x78] sm:$0xff] %v404
                  %v406 = vld [vmem:[%s312 + $0x88] sm:$0xff]
                  %407 = vst [vmem:[%s313 + $0x80] sm:$0xff] %v406
                  %v408 = vld [vmem:[%s312 + $0x90] sm:$0xff]
                  %409 = vst [vmem:[%s313 + $0x88] sm:$0xff] %v408
                  %v410 = vld [vmem:[%s312 + $0x98] sm:$0xff]
                  %411 = vst [vmem:[%s313 + $0x90] sm:$0xff] %v410
                  %v412 = vld [vmem:[%s312 + $0xa0] sm:$0xff]
                  %413 = vst [vmem:[%s313 + $0x98] sm:$0xff] %v412
                  %v414 = vld [vmem:[%s312 + $0xa8] sm:$0xff]
                  %415 = vst [vmem:[%s313 + $0xa0] sm:$0xff] %v414
                  %v416 = vld [vmem:[%s312 + $0xb0] sm:$0xff]
                  %417 = vst [vmem:[%s313 + $0xa8] sm:$0xff] %v416
                  %v418 = vld [vmem:[%s312 + $0xb8] sm:$0xff]
                  %419 = vst [vmem:[%s313 + $0xb0] sm:$0xff] %v418
                  %v420 = vld [vmem:[%s312 + $0xc0] sm:$0xff]
                  %421 = vst [vmem:[%s313 + $0xb8] sm:$0xff] %v420
                  %v422 = vld [vmem:[%s312 + $0xc8] sm:$0xff]
                  %423 = vst [vmem:[%s313 + $0xc0] sm:$0xff] %v422
                  %v424 = vld [vmem:[%s312 + $0xd0] sm:$0xff]
                  %425 = vst [vmem:[%s313 + $0xc8] sm:$0xff] %v424
                  %v426 = vld [vmem:[%s312 + $0xd8] sm:$0xff]
                  %427 = vst [vmem:[%s313 + $0xd0] sm:$0xff] %v426
                  %v428 = vld [vmem:[%s312 + $0xe0] sm:$0xff]
                  %429 = vst [vmem:[%s313 + $0xd8] sm:$0xff] %v428
                  %v430 = vld [vmem:[%s312 + $0xe8] sm:$0xff]
                  %431 = vst [vmem:[%s313 + $0xe0] sm:$0xff] %v430
                  %v432 = vld [vmem:[%s312 + $0xf0] sm:$0xff]
                  %433 = vst [vmem:[%s313 + $0xe8] sm:$0xff] %v432
                  %v434 = vld [vmem:[%s312 + $0xf8] sm:$0xff]
                  %435 = vst [vmem:[%s313 + $0xf0] sm:$0xff] %v434
                  %v436 = vld [vmem:[%s312 + $0x100] sm:$0xff]
                  %437 = vst [vmem:[%s313 + $0xf8] sm:$0xff] %v436
                  %v438 = vld [vmem:[%s312 + $0x108] sm:$0xff]
                  %439 = vst [vmem:[%s313 + $0x100] sm:$0xff] %v438
                  %v440 = vld [vmem:[%s312 + $0x110] sm:$0xff]
                  %441 = vst [vmem:[%s313 + $0x108] sm:$0xff] %v440
                  %s442 = sadd.s32 1, %s311
                  %p443 = scmp.ge.s32.totalorder %s442, %s302
                  %s444 = scalar_select %p443, 0, %s442
                  %s445 = smul.u32 %s444, 256
                  %s446 = smul.u32 %s444, 256
                  %s447 = scalar_lea.vmem %s270, %s445
                  %s448 = scalar_lea.vmem %s262, %s446 [#allocation2]
                $region76: #{tpu_custom_call.1} parent=70 // loop_footer
                  %s308 = sadd.s32 %s306, 1
                $region77: #{tpu_custom_call.1} parent=70 // loop_footer_branch
                  %305 = sbr.rel target = $region73
                $region78: #{tpu_custom_call.1} parent=70 // loop_exit
                  _
                %s449 = sshrl.u32 %s301, 5
                %s450 = sand.u32 %s301, 31
                %s451 = smul.u32 %s449, 32
                %s452 = smul.u32 128, %s451
                %s453 = sshra.s32 %s452, 4
                %s454 = scalar_lea.vmem %s270, %s453
                %s455 = smul.u32 128, %s451
                %s456 = sshra.s32 %s455, 4
                %s457 = scalar_lea.vmem %s262, %s456 [#allocation2]
                // While loop
                $region79: #{tpu_custom_call.1} parent=70 // loop_pre_header
                  _
                $region80: #{tpu_custom_call.1} parent=70 // loop_header
                  %s461 = sphi 0, %s463
                  %p462 = scmp.ge.s32.totalorder %s461, %s450
                  %s466 = sphi 0, %s475
                  %s467 = sphi %s454, %s478
                  %s468 = sphi %s457, %s479
                $region81: #{tpu_custom_call.1} parent=70 // loop_header_branch
                  %465 = sbr.rel (%p462) target = $region85
                $region82: #{tpu_custom_call.1} parent=70 // loop_body
                  %v469 = vld [vmem:[%s467] sm:$0xff]
                  %470 = vst [vmem:[%s468] sm:$0xff] %v469
                  %v471 = vld [vmem:[%s467 + $0x18] sm:$0xff]
                  %472 = vst [vmem:[%s468 + $0x10] sm:$0xff] %v471
                  %s473 = sadd.s32 1, %s466
                  %p474 = scmp.ge.s32.totalorder %s473, %s450
                  %s475 = scalar_select %p474, 0, %s473
                  %s476 = smul.u32 %s475, 8
                  %s477 = smul.u32 %s475, 8
                  %s478 = scalar_lea.vmem %s454, %s476
                  %s479 = scalar_lea.vmem %s457, %s477 [#allocation2]
                $region83: #{tpu_custom_call.1} parent=70 // loop_footer
                  %s463 = sadd.s32 %s461, 1
                $region84: #{tpu_custom_call.1} parent=70 // loop_footer_branch
                  %460 = sbr.rel target = $region80
                $region85: #{tpu_custom_call.1} parent=70 // loop_exit
                  _
              $region71: #{tpu_custom_call.1} parent=55 // pred_fallthru
                _
              %p480 = pneg %p297
              // Predicated region
              $region86: #{tpu_custom_call.1} parent=55 // pred_check
                _
              $region87: #{tpu_custom_call.1} parent=55 // pred_check_branch
                %482 = sbr.rel (%p297) target = $region89
              $region88: #{tpu_custom_call.1} parent=55 // pred_region
                %s483 = sand.u32 %s271, 7
                %s484 = ssub.s32 %s271, %s483
                %s485 = scalar_lea.vmem %s270, %s484
                %s486 = ssub.s32 %s271, %s483
                %s487 = scalar_lea.vmem %s262, %s486 [#allocation2]
                %s488 = sshrl.u32 %s271, 3
                %s489 = sshrl.u32 %s488, 5
                // While loop
                $region90: #{tpu_custom_call.1} parent=88 // loop_pre_header
                  _
                $region91: #{tpu_custom_call.1} parent=88 // loop_header
                  %s493 = sphi 0, %s495
                  %p494 = scmp.ge.s32.totalorder %s493, %s489
                  %s498 = sphi 0, %s631
                  %s499 = sphi %s270, %s634
                  %s500 = sphi %s262, %s635
                $region92: #{tpu_custom_call.1} parent=88 // loop_header_branch
                  %497 = sbr.rel (%p494) target = $region96
                $region93: #{tpu_custom_call.1} parent=88 // loop_body
                  %v501 = vld [vmem:[%s499] sm:$0xff]
                  %502 = vst [vmem:[%s500] sm:$0xff] %v501
                  %v503 = vld [vmem:[%s499 + $0x8] sm:$0xff]
                  %504 = vst [vmem:[%s500 + $0x8] sm:$0xff] %v503
                  %v505 = vld [vmem:[%s499 + $0x10] sm:$0xff]
                  %506 = vst [vmem:[%s500 + $0x10] sm:$0xff] %v505
                  %v507 = vld [vmem:[%s499 + $0x18] sm:$0xff]
                  %508 = vst [vmem:[%s500 + $0x18] sm:$0xff] %v507
                  %v509 = vld [vmem:[%s499 + $0x20] sm:$0xff]
                  %510 = vst [vmem:[%s500 + $0x20] sm:$0xff] %v509
                  %v511 = vld [vmem:[%s499 + $0x28] sm:$0xff]
                  %512 = vst [vmem:[%s500 + $0x28] sm:$0xff] %v511
                  %v513 = vld [vmem:[%s499 + $0x30] sm:$0xff]
                  %514 = vst [vmem:[%s500 + $0x30] sm:$0xff] %v513
                  %v515 = vld [vmem:[%s499 + $0x38] sm:$0xff]
                  %516 = vst [vmem:[%s500 + $0x38] sm:$0xff] %v515
                  %v517 = vld [vmem:[%s499 + $0x40] sm:$0xff]
                  %518 = vst [vmem:[%s500 + $0x40] sm:$0xff] %v517
                  %v519 = vld [vmem:[%s499 + $0x48] sm:$0xff]
                  %520 = vst [vmem:[%s500 + $0x48] sm:$0xff] %v519
                  %v521 = vld [vmem:[%s499 + $0x50] sm:$0xff]
                  %522 = vst [vmem:[%s500 + $0x50] sm:$0xff] %v521
                  %v523 = vld [vmem:[%s499 + $0x58] sm:$0xff]
                  %524 = vst [vmem:[%s500 + $0x58] sm:$0xff] %v523
                  %v525 = vld [vmem:[%s499 + $0x60] sm:$0xff]
                  %526 = vst [vmem:[%s500 + $0x60] sm:$0xff] %v525
                  %v527 = vld [vmem:[%s499 + $0x68] sm:$0xff]
                  %528 = vst [vmem:[%s500 + $0x68] sm:$0xff] %v527
                  %v529 = vld [vmem:[%s499 + $0x70] sm:$0xff]
                  %530 = vst [vmem:[%s500 + $0x70] sm:$0xff] %v529
                  %v531 = vld [vmem:[%s499 + $0x78] sm:$0xff]
                  %532 = vst [vmem:[%s500 + $0x78] sm:$0xff] %v531
                  %v533 = vld [vmem:[%s499 + $0x80] sm:$0xff]
                  %534 = vst [vmem:[%s500 + $0x80] sm:$0xff] %v533
                  %v535 = vld [vmem:[%s499 + $0x88] sm:$0xff]
                  %536 = vst [vmem:[%s500 + $0x88] sm:$0xff] %v535
                  %v537 = vld [vmem:[%s499 + $0x90] sm:$0xff]
                  %538 = vst [vmem:[%s500 + $0x90] sm:$0xff] %v537
                  %v539 = vld [vmem:[%s499 + $0x98] sm:$0xff]
                  %540 = vst [vmem:[%s500 + $0x98] sm:$0xff] %v539
                  %v541 = vld [vmem:[%s499 + $0xa0] sm:$0xff]
                  %542 = vst [vmem:[%s500 + $0xa0] sm:$0xff] %v541
                  %v543 = vld [vmem:[%s499 + $0xa8] sm:$0xff]
                  %544 = vst [vmem:[%s500 + $0xa8] sm:$0xff] %v543
                  %v545 = vld [vmem:[%s499 + $0xb0] sm:$0xff]
                  %546 = vst [vmem:[%s500 + $0xb0] sm:$0xff] %v545
                  %v547 = vld [vmem:[%s499 + $0xb8] sm:$0xff]
                  %548 = vst [vmem:[%s500 + $0xb8] sm:$0xff] %v547
                  %v549 = vld [vmem:[%s499 + $0xc0] sm:$0xff]
                  %550 = vst [vmem:[%s500 + $0xc0] sm:$0xff] %v549
                  %v551 = vld [vmem:[%s499 + $0xc8] sm:$0xff]
                  %552 = vst [vmem:[%s500 + $0xc8] sm:$0xff] %v551
                  %v553 = vld [vmem:[%s499 + $0xd0] sm:$0xff]
                  %554 = vst [vmem:[%s500 + $0xd0] sm:$0xff] %v553
                  %v555 = vld [vmem:[%s499 + $0xd8] sm:$0xff]
                  %556 = vst [vmem:[%s500 + $0xd8] sm:$0xff] %v555
                  %v557 = vld [vmem:[%s499 + $0xe0] sm:$0xff]
                  %558 = vst [vmem:[%s500 + $0xe0] sm:$0xff] %v557
                  %v559 = vld [vmem:[%s499 + $0xe8] sm:$0xff]
                  %560 = vst [vmem:[%s500 + $0xe8] sm:$0xff] %v559
                  %v561 = vld [vmem:[%s499 + $0xf0] sm:$0xff]
                  %562 = vst [vmem:[%s500 + $0xf0] sm:$0xff] %v561
                  %v563 = vld [vmem:[%s499 + $0xf8] sm:$0xff]
                  %564 = vst [vmem:[%s500 + $0xf8] sm:$0xff] %v563
                  %v565 = vld [vmem:[%s499 + $0x18] sm:$0xff]
                  %566 = vst [vmem:[%s500 + $0x10] sm:$0xff] %v565
                  %v567 = vld [vmem:[%s499 + $0x20] sm:$0xff]
                  %568 = vst [vmem:[%s500 + $0x18] sm:$0xff] %v567
                  %v569 = vld [vmem:[%s499 + $0x28] sm:$0xff]
                  %570 = vst [vmem:[%s500 + $0x20] sm:$0xff] %v569
                  %v571 = vld [vmem:[%s499 + $0x30] sm:$0xff]
                  %572 = vst [vmem:[%s500 + $0x28] sm:$0xff] %v571
                  %v573 = vld [vmem:[%s499 + $0x38] sm:$0xff]
                  %574 = vst [vmem:[%s500 + $0x30] sm:$0xff] %v573
                  %v575 = vld [vmem:[%s499 + $0x40] sm:$0xff]
                  %576 = vst [vmem:[%s500 + $0x38] sm:$0xff] %v575
                  %v577 = vld [vmem:[%s499 + $0x48] sm:$0xff]
                  %578 = vst [vmem:[%s500 + $0x40] sm:$0xff] %v577
                  %v579 = vld [vmem:[%s499 + $0x50] sm:$0xff]
                  %580 = vst [vmem:[%s500 + $0x48] sm:$0xff] %v579
                  %v581 = vld [vmem:[%s499 + $0x58] sm:$0xff]
                  %582 = vst [vmem:[%s500 + $0x50] sm:$0xff] %v581
                  %v583 = vld [vmem:[%s499 + $0x60] sm:$0xff]
                  %584 = vst [vmem:[%s500 + $0x58] sm:$0xff] %v583
                  %v585 = vld [vmem:[%s499 + $0x68] sm:$0xff]
                  %586 = vst [vmem:[%s500 + $0x60] sm:$0xff] %v585
                  %v587 = vld [vmem:[%s499 + $0x70] sm:$0xff]
                  %588 = vst [vmem:[%s500 + $0x68] sm:$0xff] %v587
                  %v589 = vld [vmem:[%s499 + $0x78] sm:$0xff]
                  %590 = vst [vmem:[%s500 + $0x70] sm:$0xff] %v589
                  %v591 = vld [vmem:[%s499 + $0x80] sm:$0xff]
                  %592 = vst [vmem:[%s500 + $0x78] sm:$0xff] %v591
                  %v593 = vld [vmem:[%s499 + $0x88] sm:$0xff]
                  %594 = vst [vmem:[%s500 + $0x80] sm:$0xff] %v593
                  %v595 = vld [vmem:[%s499 + $0x90] sm:$0xff]
                  %596 = vst [vmem:[%s500 + $0x88] sm:$0xff] %v595
                  %v597 = vld [vmem:[%s499 + $0x98] sm:$0xff]
                  %598 = vst [vmem:[%s500 + $0x90] sm:$0xff] %v597
                  %v599 = vld [vmem:[%s499 + $0xa0] sm:$0xff]
                  %600 = vst [vmem:[%s500 + $0x98] sm:$0xff] %v599
                  %v601 = vld [vmem:[%s499 + $0xa8] sm:$0xff]
                  %602 = vst [vmem:[%s500 + $0xa0] sm:$0xff] %v601
                  %v603 = vld [vmem:[%s499 + $0xb0] sm:$0xff]
                  %604 = vst [vmem:[%s500 + $0xa8] sm:$0xff] %v603
                  %v605 = vld [vmem:[%s499 + $0xb8] sm:$0xff]
                  %606 = vst [vmem:[%s500 + $0xb0] sm:$0xff] %v605
                  %v607 = vld [vmem:[%s499 + $0xc0] sm:$0xff]
                  %608 = vst [vmem:[%s500 + $0xb8] sm:$0xff] %v607
                  %v609 = vld [vmem:[%s499 + $0xc8] sm:$0xff]
                  %610 = vst [vmem:[%s500 + $0xc0] sm:$0xff] %v609
                  %v611 = vld [vmem:[%s499 + $0xd0] sm:$0xff]
                  %612 = vst [vmem:[%s500 + $0xc8] sm:$0xff] %v611
                  %v613 = vld [vmem:[%s499 + $0xd8] sm:$0xff]
                  %614 = vst [vmem:[%s500 + $0xd0] sm:$0xff] %v613
                  %v615 = vld [vmem:[%s499 + $0xe0] sm:$0xff]
                  %616 = vst [vmem:[%s500 + $0xd8] sm:$0xff] %v615
                  %v617 = vld [vmem:[%s499 + $0xe8] sm:$0xff]
                  %618 = vst [vmem:[%s500 + $0xe0] sm:$0xff] %v617
                  %v619 = vld [vmem:[%s499 + $0xf0] sm:$0xff]
                  %620 = vst [vmem:[%s500 + $0xe8] sm:$0xff] %v619
                  %v621 = vld [vmem:[%s499 + $0xf8] sm:$0xff]
                  %622 = vst [vmem:[%s500 + $0xf0] sm:$0xff] %v621
                  %v623 = vld [vmem:[%s499 + $0x100] sm:$0xff]
                  %624 = vst [vmem:[%s500 + $0xf8] sm:$0xff] %v623
                  %v625 = vld [vmem:[%s499 + $0x108] sm:$0xff]
                  %626 = vst [vmem:[%s500 + $0x100] sm:$0xff] %v625
                  %v627 = vld [vmem:[%s499 + $0x110] sm:$0xff]
                  %628 = vst [vmem:[%s500 + $0x108] sm:$0xff] %v627
                  %s629 = sadd.s32 1, %s498
                  %p630 = scmp.ge.s32.totalorder %s629, %s489
                  %s631 = scalar_select %p630, 0, %s629
                  %s632 = smul.u32 %s631, 256
                  %s633 = smul.u32 %s631, 256
                  %s634 = scalar_lea.vmem %s270, %s632
                  %s635 = scalar_lea.vmem %s262, %s633 [#allocation2]
                $region94: #{tpu_custom_call.1} parent=88 // loop_footer
                  %s495 = sadd.s32 %s493, 1
                $region95: #{tpu_custom_call.1} parent=88 // loop_footer_branch
                  %492 = sbr.rel target = $region91
                $region96: #{tpu_custom_call.1} parent=88 // loop_exit
                  _
                %s636 = sshrl.u32 %s488, 5
                %s637 = sand.u32 %s488, 31
                %s638 = smul.u32 %s636, 32
                %s639 = smul.u32 128, %s638
                %s640 = sshra.s32 %s639, 4
                %s641 = scalar_lea.vmem %s270, %s640
                %s642 = smul.u32 128, %s638
                %s643 = sshra.s32 %s642, 4
                %s644 = scalar_lea.vmem %s262, %s643 [#allocation2]
                // While loop
                $region97: #{tpu_custom_call.1} parent=88 // loop_pre_header
                  _
                $region98: #{tpu_custom_call.1} parent=88 // loop_header
                  %s648 = sphi 0, %s650
                  %p649 = scmp.ge.s32.totalorder %s648, %s637
                  %s653 = sphi 0, %s662
                  %s654 = sphi %s641, %s665
                  %s655 = sphi %s644, %s666
                $region99: #{tpu_custom_call.1} parent=88 // loop_header_branch
                  %652 = sbr.rel (%p649) target = $region103
                $region100: #{tpu_custom_call.1} parent=88 // loop_body
                  %v656 = vld [vmem:[%s654] sm:$0xff]
                  %657 = vst [vmem:[%s655] sm:$0xff] %v656
                  %v658 = vld [vmem:[%s654 + $0x18] sm:$0xff]
                  %659 = vst [vmem:[%s655 + $0x10] sm:$0xff] %v658
                  %s660 = sadd.s32 1, %s653
                  %p661 = scmp.ge.s32.totalorder %s660, %s637
                  %s662 = scalar_select %p661, 0, %s660
                  %s663 = smul.u32 %s662, 8
                  %s664 = smul.u32 %s662, 8
                  %s665 = scalar_lea.vmem %s641, %s663
                  %s666 = scalar_lea.vmem %s644, %s664 [#allocation2]
                $region101: #{tpu_custom_call.1} parent=88 // loop_footer
                  %s650 = sadd.s32 %s648, 1
                $region102: #{tpu_custom_call.1} parent=88 // loop_footer_branch
                  %647 = sbr.rel target = $region98
                $region103: #{tpu_custom_call.1} parent=88 // loop_exit
                  _
                %s667 = sshll.u32 1, %s483
                %s668 = ssub.s32 %s667, 1
                loop: start=0, step=1, limit=1
                $region104: #{tpu_custom_call.1} parent=88 // loop_pre_header
                  _
                $region105: #{tpu_custom_call.1} parent=88 // loop_header
                  %s670 = sphi 0, %s674
                  %p671 = scmp.ge.s32.totalorder %s670, 1
                  %s675 = sphi %s485, %s485
                  %s676 = sphi %s487, %s487
                $region106: #{tpu_custom_call.1} parent=88 // loop_header_branch
                  %673 = sbr.rel (%p671) target = $region110
                $region107: #{tpu_custom_call.1} parent=88 // loop_body
                  %v677 = vld [vmem:[%s675] sm:%s668]
                  %678 = vst [vmem:[%s676] sm:%s668] %v677
                  %v679 = vld [vmem:[%s675 + $0x18] sm:%s668]
                  %680 = vst [vmem:[%s676 + $0x10] sm:%s668] %v679
                $region108: #{tpu_custom_call.1} parent=88 // loop_footer
                  %s674 = sadd.s32 1, %s670
                $region109: #{tpu_custom_call.1} parent=88 // loop_footer_branch
                  %669 = sbr.rel target = $region105
                $region110: #{tpu_custom_call.1} parent=88 // loop_exit
                  _
              $region89: #{tpu_custom_call.1} parent=55 // pred_fallthru
                _
            $region56: #{tpu_custom_call.1} parent=51 // pred_fallthru
              _
            // Predicated region
            $region57: #{tpu_custom_call.1} parent=51 // pred_check
              %p279 = pneg %p275
            $region58: #{tpu_custom_call.1} parent=51 // pred_check_branch
              %281 = sbr.rel (%p279) target = $region60
            $region59: #{tpu_custom_call.1} parent=51 // pred_region
              %s282 = sshll.u32 1, %s271
              %s283 = ssub.s32 %s282, 1
              loop: start=0, step=1, limit=1
              $region61: #{tpu_custom_call.1} parent=59 // loop_pre_header
                _
              $region62: #{tpu_custom_call.1} parent=59 // loop_header
                %s285 = sphi 0, %s289
                %p286 = scmp.ge.s32.totalorder %s285, 1
                %s290 = sphi %s270, %s270
                %s291 = sphi %s262, %s262
              $region63: #{tpu_custom_call.1} parent=59 // loop_header_branch
                %288 = sbr.rel (%p286) target = $region67
              $region64: #{tpu_custom_call.1} parent=59 // loop_body
                %v292 = vld [vmem:[%s290] sm:%s283]
                %293 = vst [vmem:[%s291] sm:%s283] %v292
                %v294 = vld [vmem:[%s290 + $0x18] sm:%s283]
                %295 = vst [vmem:[%s291 + $0x10] sm:%s283] %v294
              $region65: #{tpu_custom_call.1} parent=59 // loop_footer
                %s289 = sadd.s32 1, %s285
              $region66: #{tpu_custom_call.1} parent=59 // loop_footer_branch
                %284 = sbr.rel target = $region62
              $region67: #{tpu_custom_call.1} parent=59 // loop_exit
                _
            $region60: #{tpu_custom_call.1} parent=51 // pred_fallthru
              _
          $region52: #{tpu_custom_call.1} parent=47 // pred_fallthru
            _
          %681 = vnop
        $region48: #{tpu_custom_call.1} parent=43 // pred_fallthru
          _
      $region44: #{tpu_custom_call.1} parent=5 // pred_fallthru
        _
      %p682 = scmp.le.s32.totalorder 1, %s17
      %p683 = scmp.lt.s32.totalorder %s17, 3
      %p684 = pnand %p682, %p683
      %p685 = pneg %p684
      // Predicated region
      $region111: #{tpu_custom_call.1} parent=5 // pred_check
        _
      $region112: #{tpu_custom_call.1} parent=5 // pred_check_branch
        %687 = sbr.rel (%p684) target = $region114
      $region113: #{tpu_custom_call.1} parent=5 // pred_region
        %s688 = ssub.s32 %s17, 1
        %s689 = sand.u32 %s30, 1
        %s690 = sand.u32 %s30, 1
        %s691 = smul.addr %s690, 32
        %s692 = scalar_lea.vmem [#allocation2], %s691
        // Predicated region
        $region115: #{tpu_custom_call.1} parent=113 // pred_check
          %p693 = pneg %p43
        $region116: #{tpu_custom_call.1} parent=113 // pred_check_branch
          %695 = sbr.rel (%p693) target = $region118
        $region117: #{tpu_custom_call.1} parent=113 // pred_region
          _
        $region118: #{tpu_custom_call.1} parent=113 // pred_fallthru
          _
        %s696 = sand.u32 %s30, 1
        %s697 = sand.u32 %s30, 1
        %s698 = smul.addr %s697, 32
        %s699 = scalar_lea.vmem [#allocation2], %s698
        %p700 = pneg %p43
        %p701 = pneg %p40
        %p702 = pneg %p64
        %p703 = pneg %p61
        %p704 = pneg %p85
        %p705 = pneg %p82
        %p706 = pneg %p106
        %p707 = pneg %p103
        %p708 = pneg %p127
        %p709 = pneg %p124
        %p710 = pneg %p148
        %p711 = pneg %p145
        %p712 = pneg %p169
        %p713 = pneg %p166
        %p714 = pneg %p190
        %p715 = pneg %p187
        %p716 = pneg %p216
        %p717 = pneg %p213
        %s718 = sand.u32 %s203, 1
        %s719 = scalar_lea.sflag [#allocation4], %s718
        %s720 = sand.u32 %s203, 1
        %s721 = smul.addr %s720, 32
        %s722 = scalar_lea.vmem [#allocation3], %s721
        %s723 = smul.u32 2, %s22
        %s724 = ssub.s32 3, %s723
        %p725 = scmp.lt.s32.totalorder %s724, 2
        %s726 = scalar_select %p725, %s724, 2
        %s727 = smul.u32 256, %s726
        %s728 = smul.u32 2, %s22
        %s729 = ssub.s32 3, %s728
        %p730 = scmp.lt.s32.totalorder %s729, 2
        %s731 = scalar_select %p730, %s729, 2
        %s732 = smul.u32 256, %s731
        %v733 = vld [vmem:[%s692] sm:$0xff]
        %v734 = vld [vmem:[%s692 + $0x8] sm:$0xff]
        %v735 = vld [vmem:[%s692 + $0x10] sm:$0x7f]
        %v736 = vld [vmem:[%s692 + $0x18] sm:$0x7f]
        %v737 = vcvt.s32.f32 %v733
        %v738 = vcvt.s32.f32 %v734
        %v739 = vcvt.s32.f32 %v735
        %v740 = vcvt.s32.f32 %v736
        %v741 = vlaneseq
        %v742 = vshrl.u32 %v741, 7
        %v743 = vadd.s32 %v742, 8
        %v744 = vadd.s32 %v742, 16
        %v745 = vadd.s32 %v742, 24
        %v746 = vadd.s32 %v742, 32
        %v747 = vadd.s32 %v742, 40
        %v748 = vadd.s32 %v742, 48
        %v749 = vadd.s32 %v742, 56
        %v750 = vadd.s32 %v742, 64
        %v751 = vadd.s32 %v742, 72
        %v752 = vadd.s32 %v742, 80
        %v753 = vadd.s32 %v742, 88
        %v754 = vadd.s32 %v742, 96
        %v755 = vadd.s32 %v742, 104
        %v756 = vadd.s32 %v742, 112
        %v757 = vadd.s32 %v742, 120
        %v758 = vadd.s32 %v742, 128
        %v759 = vadd.s32 %v742, 136
        %v760 = vadd.s32 %v742, 144
        %v761 = vadd.s32 %v742, 152
        %v762 = vadd.s32 %v742, 160
        %v763 = vadd.s32 %v742, 168
        %v764 = vadd.s32 %v742, 176
        %v765 = vadd.s32 %v742, 184
        %v766 = vlaneseq
        %v767 = vshrl.u32 %v766, 7
        %v768 = vsub.s32 0, %v767
        %v769 = vrot.slane %v733, %v768
        %v770 = vlaneseq
        %v771 = vshrl.u32 %v770, 7
        %v772 = vsub.s32 0, %v771
        %v773 = vrot.slane %v734, %v772
        %vm774 = vcmp.eq.s32.totalorder %v742, %v769
        %vm775 = vcmp.eq.s32.totalorder %v742, %v773
        %vm776 = vcmp.eq.s32.totalorder %v743, %v769
        %vm777 = vcmp.eq.s32.totalorder %v743, %v773
        %vm778 = vcmp.eq.s32.totalorder %v744, %v769
        %vm779 = vcmp.eq.s32.totalorder %v744, %v773
        %vm780 = vcmp.eq.s32.totalorder %v745, %v769
        %vm781 = vcmp.eq.s32.totalorder %v745, %v773
        %vm782 = vcmp.eq.s32.totalorder %v746, %v769
        %vm783 = vcmp.eq.s32.totalorder %v746, %v773
        %vm784 = vcmp.eq.s32.totalorder %v747, %v769
        %vm785 = vcmp.eq.s32.totalorder %v747, %v773
        %vm786 = vcmp.eq.s32.totalorder %v748, %v769
        %vm787 = vcmp.eq.s32.totalorder %v748, %v773
        %vm788 = vcmp.eq.s32.totalorder %v749, %v769
        %vm789 = vcmp.eq.s32.totalorder %v749, %v773
        %vm790 = vcmp.eq.s32.totalorder %v750, %v769
        %vm791 = vcmp.eq.s32.totalorder %v750, %v773
        %vm792 = vcmp.eq.s32.totalorder %v751, %v769
        %vm793 = vcmp.eq.s32.totalorder %v751, %v773
        %vm794 = vcmp.eq.s32.totalorder %v752, %v769
        %vm795 = vcmp.eq.s32.totalorder %v752, %v773
        %vm796 = vcmp.eq.s32.totalorder %v753, %v769
        %vm797 = vcmp.eq.s32.totalorder %v753, %v773
        %vm798 = vcmp.eq.s32.totalorder %v754, %v769
        %vm799 = vcmp.eq.s32.totalorder %v754, %v773
        %vm800 = vcmp.eq.s32.totalorder %v755, %v769
        %vm801 = vcmp.eq.s32.totalorder %v755, %v773
        %vm802 = vcmp.eq.s32.totalorder %v756, %v769
        %vm803 = vcmp.eq.s32.totalorder %v756, %v773
        %vm804 = vcmp.eq.s32.totalorder %v757, %v769
        %vm805 = vcmp.eq.s32.totalorder %v757, %v773
        %vm806 = vcmp.eq.s32.totalorder %v758, %v769
        %vm807 = vcmp.eq.s32.totalorder %v758, %v773
        %vm808 = vcmp.eq.s32.totalorder %v759, %v769
        %vm809 = vcmp.eq.s32.totalorder %v759, %v773
        %vm810 = vcmp.eq.s32.totalorder %v760, %v769
        %vm811 = vcmp.eq.s32.totalorder %v760, %v773
        %vm812 = vcmp.eq.s32.totalorder %v761, %v769
        %vm813 = vcmp.eq.s32.totalorder %v761, %v773
        %vm814 = vcmp.eq.s32.totalorder %v762, %v769
        %vm815 = vcmp.eq.s32.totalorder %v762, %v773
        %vm816 = vcmp.eq.s32.totalorder %v763, %v769
        %vm817 = vcmp.eq.s32.totalorder %v763, %v773
        %vm818 = vcmp.eq.s32.totalorder %v764, %v769
        %vm819 = vcmp.eq.s32.totalorder %v764, %v773
        %vm820 = vcmp.eq.s32.totalorder %v765, %v769
        %vm821 = vcmp.eq.s32.totalorder %v765, %v773
        %v822 = vadd.s32 %v733, 64
        %v823 = vadd.s32 %v734, 64
        %v824 = vlaneseq
        %v825 = vshrl.u32 %v824, 7
        %v826 = vsub.s32 1, %v825
        %v827 = vrot.slane %v822, %v826
        %v828 = vlaneseq
        %v829 = vshrl.u32 %v828, 7
        %v830 = vsub.s32 1, %v829
        %v831 = vrot.slane %v823, %v830
        %vm832 = vcmp.eq.s32.totalorder %v742, %v827
        %vm833 = vcmp.eq.s32.totalorder %v742, %v831
        %vm834 = vcmp.eq.s32.totalorder %v743, %v827
        %vm835 = vcmp.eq.s32.totalorder %v743, %v831
        %vm836 = vcmp.eq.s32.totalorder %v744, %v827
        %vm837 = vcmp.eq.s32.totalorder %v744, %v831
        %vm838 = vcmp.eq.s32.totalorder %v745, %v827
        %vm839 = vcmp.eq.s32.totalorder %v745, %v831
        %vm840 = vcmp.eq.s32.totalorder %v746, %v827
        %vm841 = vcmp.eq.s32.totalorder %v746, %v831
        %vm842 = vcmp.eq.s32.totalorder %v747, %v827
        %vm843 = vcmp.eq.s32.totalorder %v747, %v831
        %vm844 = vcmp.eq.s32.totalorder %v748, %v827
        %vm845 = vcmp.eq.s32.totalorder %v748, %v831
        %vm846 = vcmp.eq.s32.totalorder %v749, %v827
        %vm847 = vcmp.eq.s32.totalorder %v749, %v831
        %vm848 = vcmp.eq.s32.totalorder %v750, %v827
        %vm849 = vcmp.eq.s32.totalorder %v750, %v831
        %vm850 = vcmp.eq.s32.totalorder %v751, %v827
        %vm851 = vcmp.eq.s32.totalorder %v751, %v831
        %vm852 = vcmp.eq.s32.totalorder %v752, %v827
        %vm853 = vcmp.eq.s32.totalorder %v752, %v831
        %vm854 = vcmp.eq.s32.totalorder %v753, %v827
        %vm855 = vcmp.eq.s32.totalorder %v753, %v831
        %vm856 = vcmp.eq.s32.totalorder %v754, %v827
        %vm857 = vcmp.eq.s32.totalorder %v754, %v831
        %vm858 = vcmp.eq.s32.totalorder %v755, %v827
        %vm859 = vcmp.eq.s32.totalorder %v755, %v831
        %vm860 = vcmp.eq.s32.totalorder %v756, %v827
        %vm861 = vcmp.eq.s32.totalorder %v756, %v831
        %vm862 = vcmp.eq.s32.totalorder %v757, %v827
        %vm863 = vcmp.eq.s32.totalorder %v757, %v831
        %vm864 = vcmp.eq.s32.totalorder %v758, %v827
        %vm865 = vcmp.eq.s32.totalorder %v758, %v831
        %vm866 = vcmp.eq.s32.totalorder %v759, %v827
        %vm867 = vcmp.eq.s32.totalorder %v759, %v831
        %vm868 = vcmp.eq.s32.totalorder %v760, %v827
        %vm869 = vcmp.eq.s32.totalorder %v760, %v831
        %vm870 = vcmp.eq.s32.totalorder %v761, %v827
        %vm871 = vcmp.eq.s32.totalorder %v761, %v831
        %vm872 = vcmp.eq.s32.totalorder %v762, %v827
        %vm873 = vcmp.eq.s32.totalorder %v762, %v831
        %vm874 = vcmp.eq.s32.totalorder %v763, %v827
        %vm875 = vcmp.eq.s32.totalorder %v763, %v831
        %vm876 = vcmp.eq.s32.totalorder %v764, %v827
        %vm877 = vcmp.eq.s32.totalorder %v764, %v831
        %vm878 = vcmp.eq.s32.totalorder %v765, %v827
        %vm879 = vcmp.eq.s32.totalorder %v765, %v831
        %vm880 = vmor %vm774, %vm832
        %vm881 = vmor %vm775, %vm833
        %vm882 = vmor %vm776, %vm834
        %vm883 = vmor %vm777, %vm835
        %vm884 = vmor %vm778, %vm836
        %vm885 = vmor %vm779, %vm837
        %vm886 = vmor %vm780, %vm838
        %vm887 = vmor %vm781, %vm839
        %vm888 = vmor %vm782, %vm840
        %vm889 = vmor %vm783, %vm841
        %vm890 = vmor %vm784, %vm842
        %vm891 = vmor %vm785, %vm843
        %vm892 = vmor %vm786, %vm844
        %vm893 = vmor %vm787, %vm845
        %vm894 = vmor %vm788, %vm846
        %vm895 = vmor %vm789, %vm847
        %vm896 = vmor %vm790, %vm848
        %vm897 = vmor %vm791, %vm849
        %vm898 = vmor %vm792, %vm850
        %vm899 = vmor %vm793, %vm851
        %vm900 = vmor %vm794, %vm852
        %vm901 = vmor %vm795, %vm853
        %vm902 = vmor %vm796, %vm854
        %vm903 = vmor %vm797, %vm855
        %vm904 = vmor %vm798, %vm856
        %vm905 = vmor %vm799, %vm857
        %vm906 = vmor %vm800, %vm858
        %vm907 = vmor %vm801, %vm859
        %vm908 = vmor %vm802, %vm860
        %vm909 = vmor %vm803, %vm861
        %vm910 = vmor %vm804, %vm862
        %vm911 = vmor %vm805, %vm863
        %vm912 = vmor %vm806, %vm864
        %vm913 = vmor %vm807, %vm865
        %vm914 = vmor %vm808, %vm866
        %vm915 = vmor %vm809, %vm867
        %vm916 = vmor %vm810, %vm868
        %vm917 = vmor %vm811, %vm869
        %vm918 = vmor %vm812, %vm870
        %vm919 = vmor %vm813, %vm871
        %vm920 = vmor %vm814, %vm872
        %vm921 = vmor %vm815, %vm873
        %vm922 = vmor %vm816, %vm874
        %vm923 = vmor %vm817, %vm875
        %vm924 = vmor %vm818, %vm876
        %vm925 = vmor %vm819, %vm877
        %vm926 = vmor %vm820, %vm878
        %vm927 = vmor %vm821, %vm879
        %v928 = vadd.s32 %v733, 128
        %v929 = vadd.s32 %v734, 128
        %v930 = vlaneseq
        %v931 = vshrl.u32 %v930, 7
        %v932 = vsub.s32 2, %v931
        %v933 = vrot.slane %v928, %v932
        %v934 = vlaneseq
        %v935 = vshrl.u32 %v934, 7
        %v936 = vsub.s32 2, %v935
        %v937 = vrot.slane %v929, %v936
        %vm938 = vcmp.eq.s32.totalorder %v742, %v933
        %vm939 = vcmp.eq.s32.totalorder %v742, %v937
        %vm940 = vcmp.eq.s32.totalorder %v743, %v933
        %vm941 = vcmp.eq.s32.totalorder %v743, %v937
        %vm942 = vcmp.eq.s32.totalorder %v744, %v933
        %vm943 = vcmp.eq.s32.totalorder %v744, %v937
        %vm944 = vcmp.eq.s32.totalorder %v745, %v933
        %vm945 = vcmp.eq.s32.totalorder %v745, %v937
        %vm946 = vcmp.eq.s32.totalorder %v746, %v933
        %vm947 = vcmp.eq.s32.totalorder %v746, %v937
        %vm948 = vcmp.eq.s32.totalorder %v747, %v933
        %vm949 = vcmp.eq.s32.totalorder %v747, %v937
        %vm950 = vcmp.eq.s32.totalorder %v748, %v933
        %vm951 = vcmp.eq.s32.totalorder %v748, %v937
        %vm952 = vcmp.eq.s32.totalorder %v749, %v933
        %vm953 = vcmp.eq.s32.totalorder %v749, %v937
        %vm954 = vcmp.eq.s32.totalorder %v750, %v933
        %vm955 = vcmp.eq.s32.totalorder %v750, %v937
        %vm956 = vcmp.eq.s32.totalorder %v751, %v933
        %vm957 = vcmp.eq.s32.totalorder %v751, %v937
        %vm958 = vcmp.eq.s32.totalorder %v752, %v933
        %vm959 = vcmp.eq.s32.totalorder %v752, %v937
        %vm960 = vcmp.eq.s32.totalorder %v753, %v933
        %vm961 = vcmp.eq.s32.totalorder %v753, %v937
        %vm962 = vcmp.eq.s32.totalorder %v754, %v933
        %vm963 = vcmp.eq.s32.totalorder %v754, %v937
        %vm964 = vcmp.eq.s32.totalorder %v755, %v933
        %vm965 = vcmp.eq.s32.totalorder %v755, %v937
        %vm966 = vcmp.eq.s32.totalorder %v756, %v933
        %vm967 = vcmp.eq.s32.totalorder %v756, %v937
        %vm968 = vcmp.eq.s32.totalorder %v757, %v933
        %vm969 = vcmp.eq.s32.totalorder %v757, %v937
        %vm970 = vcmp.eq.s32.totalorder %v758, %v933
        %vm971 = vcmp.eq.s32.totalorder %v758, %v937
        %vm972 = vcmp.eq.s32.totalorder %v759, %v933
        %vm973 = vcmp.eq.s32.totalorder %v759, %v937
        %vm974 = vcmp.eq.s32.totalorder %v760, %v933
        %vm975 = vcmp.eq.s32.totalorder %v760, %v937
        %vm976 = vcmp.eq.s32.totalorder %v761, %v933
        %vm977 = vcmp.eq.s32.totalorder %v761, %v937
        %vm978 = vcmp.eq.s32.totalorder %v762, %v933
        %vm979 = vcmp.eq.s32.totalorder %v762, %v937
        %vm980 = vcmp.eq.s32.totalorder %v763, %v933
        %vm981 = vcmp.eq.s32.totalorder %v763, %v937
        %vm982 = vcmp.eq.s32.totalorder %v764, %v933
        %vm983 = vcmp.eq.s32.totalorder %v764, %v937
        %vm984 = vcmp.eq.s32.totalorder %v765, %v933
        %vm985 = vcmp.eq.s32.totalorder %v765, %v937
        %vm986 = vmor %vm880, %vm938
        %vm987 = vmor %vm881, %vm939
        %vm988 = vmor %vm882, %vm940
        %vm989 = vmor %vm883, %vm941
        %vm990 = vmor %vm884, %vm942
        %vm991 = vmor %vm885, %vm943
        %vm992 = vmor %vm886, %vm944
        %vm993 = vmor %vm887, %vm945
        %vm994 = vmor %vm888, %vm946
        %vm995 = vmor %vm889, %vm947
        %vm996 = vmor %vm890, %vm948
        %vm997 = vmor %vm891, %vm949
        %vm998 = vmor %vm892, %vm950
        %vm999 = vmor %vm893, %vm951
        %vm1000 = vmor %vm894, %vm952
        %vm1001 = vmor %vm895, %vm953
        %vm1002 = vmor %vm896, %vm954
        %vm1003 = vmor %vm897, %vm955
        %vm1004 = vmor %vm898, %vm956
        %vm1005 = vmor %vm899, %vm957
        %vm1006 = vmor %vm900, %vm958
        %vm1007 = vmor %vm901, %vm959
        %vm1008 = vmor %vm902, %vm960
        %vm1009 = vmor %vm903, %vm961
        %vm1010 = vmor %vm904, %vm962
        %vm1011 = vmor %vm905, %vm963
        %vm1012 = vmor %vm906, %vm964
        %vm1013 = vmor %vm907, %vm965
        %vm1014 = vmor %vm908, %vm966
        %vm1015 = vmor %vm909, %vm967
        %vm1016 = vmor %vm910, %vm968
        %vm1017 = vmor %vm911, %vm969
        %vm1018 = vmor %vm912, %vm970
        %vm1019 = vmor %vm913, %vm971
        %vm1020 = vmor %vm914, %vm972
        %vm1021 = vmor %vm915, %vm973
        %vm1022 = vmor %vm916, %vm974
        %vm1023 = vmor %vm917, %vm975
        %vm1024 = vmor %vm918, %vm976
        %vm1025 = vmor %vm919, %vm977
        %vm1026 = vmor %vm920, %vm978
        %vm1027 = vmor %vm921, %vm979
        %vm1028 = vmor %vm922, %vm980
        %vm1029 = vmor %vm923, %vm981
        %vm1030 = vmor %vm924, %vm982
        %vm1031 = vmor %vm925, %vm983
        %vm1032 = vmor %vm926, %vm984
        %vm1033 = vmor %vm927, %vm985
        %v1034 = vsel %vm986, 1, 0
        %v1035 = vsel %vm987, 1, 0
        %v1036 = vsel %vm988, 1, 0
        %v1037 = vsel %vm989, 1, 0
        %v1038 = vsel %vm990, 1, 0
        %v1039 = vsel %vm991, 1, 0
        %v1040 = vsel %vm992, 1, 0
        %v1041 = vsel %vm993, 1, 0
        %v1042 = vsel %vm994, 1, 0
        %v1043 = vsel %vm995, 1, 0
        %v1044 = vsel %vm996, 1, 0
        %v1045 = vsel %vm997, 1, 0
        %v1046 = vsel %vm998, 1, 0
        %v1047 = vsel %vm999, 1, 0
        %v1048 = vsel %vm1000, 1, 0
        %v1049 = vsel %vm1001, 1, 0
        %v1050 = vsel %vm1002, 1, 0
        %v1051 = vsel %vm1003, 1, 0
        %v1052 = vsel %vm1004, 1, 0
        %v1053 = vsel %vm1005, 1, 0
        %v1054 = vsel %vm1006, 1, 0
        %v1055 = vsel %vm1007, 1, 0
        %v1056 = vsel %vm1008, 1, 0
        %v1057 = vsel %vm1009, 1, 0
        %v1058 = vsel %vm1010, 1, 0
        %v1059 = vsel %vm1011, 1, 0
        %v1060 = vsel %vm1012, 1, 0
        %v1061 = vsel %vm1013, 1, 0
        %v1062 = vsel %vm1014, 1, 0
        %v1063 = vsel %vm1015, 1, 0
        %v1064 = vsel %vm1016, 1, 0
        %v1065 = vsel %vm1017, 1, 0
        %v1066 = vsel %vm1018, 1, 0
        %v1067 = vsel %vm1019, 1, 0
        %v1068 = vsel %vm1020, 1, 0
        %v1069 = vsel %vm1021, 1, 0
        %v1070 = vsel %vm1022, 1, 0
        %v1071 = vsel %vm1023, 1, 0
        %v1072 = vsel %vm1024, 1, 0
        %v1073 = vsel %vm1025, 1, 0
        %v1074 = vsel %vm1026, 1, 0
        %v1075 = vsel %vm1027, 1, 0
        %v1076 = vsel %vm1028, 1, 0
        %v1077 = vsel %vm1029, 1, 0
        %v1078 = vsel %vm1030, 1, 0
        %v1079 = vsel %vm1031, 1, 0
        %v1080 = vsel %vm1032, 1, 0
        %v1081 = vsel %vm1033, 1, 0
        %v1082 = vcvt.s32.f32 %v1034
        %v1083 = vcvt.s32.f32 %v1035
        %v1084 = vcvt.s32.f32 %v1036
        %v1085 = vcvt.s32.f32 %v1037
        %v1086 = vcvt.s32.f32 %v1038
        %v1087 = vcvt.s32.f32 %v1039
        %v1088 = vcvt.s32.f32 %v1040
        %v1089 = vcvt.s32.f32 %v1041
        %v1090 = vcvt.s32.f32 %v1042
        %v1091 = vcvt.s32.f32 %v1043
        %v1092 = vcvt.s32.f32 %v1044
        %v1093 = vcvt.s32.f32 %v1045
        %v1094 = vcvt.s32.f32 %v1046
        %v1095 = vcvt.s32.f32 %v1047
        %v1096 = vcvt.s32.f32 %v1048
        %v1097 = vcvt.s32.f32 %v1049
        %v1098 = vcvt.s32.f32 %v1050
        %v1099 = vcvt.s32.f32 %v1051
        %v1100 = vcvt.s32.f32 %v1052
        %v1101 = vcvt.s32.f32 %v1053
        %v1102 = vcvt.s32.f32 %v1054
        %v1103 = vcvt.s32.f32 %v1055
        %v1104 = vcvt.s32.f32 %v1056
        %v1105 = vcvt.s32.f32 %v1057
        %v1106 = vcvt.s32.f32 %v1058
        %v1107 = vcvt.s32.f32 %v1059
        %v1108 = vcvt.s32.f32 %v1060
        %v1109 = vcvt.s32.f32 %v1061
        %v1110 = vcvt.s32.f32 %v1062
        %v1111 = vcvt.s32.f32 %v1063
        %v1112 = vcvt.s32.f32 %v1064
        %v1113 = vcvt.s32.f32 %v1065
        %v1114 = vcvt.s32.f32 %v1066
        %v1115 = vcvt.s32.f32 %v1067
        %v1116 = vcvt.s32.f32 %v1068
        %v1117 = vcvt.s32.f32 %v1069
        %v1118 = vcvt.s32.f32 %v1070
        %v1119 = vcvt.s32.f32 %v1071
        %v1120 = vcvt.s32.f32 %v1072
        %v1121 = vcvt.s32.f32 %v1073
        %v1122 = vcvt.s32.f32 %v1074
        %v1123 = vcvt.s32.f32 %v1075
        %v1124 = vcvt.s32.f32 %v1076
        %v1125 = vcvt.s32.f32 %v1077
        %v1126 = vcvt.s32.f32 %v1078
        %v1127 = vcvt.s32.f32 %v1079
        %v1128 = vcvt.s32.f32 %v1080
        %v1129 = vcvt.s32.f32 %v1081
        %v1130 = vld [vmem:[%s1] sm:$0xff]
        %v1131 = vld [vmem:[%s1 + $0x8] sm:$0xff]
        %v1132 = vld [vmem:[%s1 + $0x10] sm:$0xff]
        %v1133 = vld [vmem:[%s1 + $0x18] sm:$0xff]
        %v1134 = vld [vmem:[%s1 + $0x20] sm:$0xff]
        %v1135 = vld [vmem:[%s1 + $0x28] sm:$0xff]
        %v1136 = vld [vmem:[%s1 + $0x30] sm:$0xff]
        %v1137 = vld [vmem:[%s1 + $0x38] sm:$0xff]
        %v1138 = vld [vmem:[%s1 + $0x40] sm:$0xff]
        %v1139 = vld [vmem:[%s1 + $0x48] sm:$0xff]
        %v1140 = vld [vmem:[%s1 + $0x50] sm:$0xff]
        %v1141 = vld [vmem:[%s1 + $0x58] sm:$0xff]
        %v1142 = vld [vmem:[%s1 + $0x60] sm:$0x3]
        %v1143 = vld [vmem:[%s1 + $0x68] sm:$0x3]
        %v1144 = vld [vmem:[%s2] sm:$0xff]
        %v1145 = vld [vmem:[%s2 + $0x8] sm:$0xff]
        %v1146 = vld [vmem:[%s2 + $0x10] sm:$0xff]
        %v1147 = vld [vmem:[%s2 + $0x18] sm:$0xff]
        %v1148 = vld [vmem:[%s2 + $0x20] sm:$0xff]
        %v1149 = vld [vmem:[%s2 + $0x28] sm:$0xff]
        %v1150 = vld [vmem:[%s2 + $0x30] sm:$0x3]
        %1152 = vset.pattern.permute.xlu0 0
        %1153 = vperm.xlu0 %1152, %v1144
        %v1154 = vpop.permute.xlu0 %1153
        %1157 = vset.pattern.permute.xlu0 0
        %1158 = vperm.xlu0 %1157, %v1145
        %v1159 = vpop.permute.xlu0 %1158
        %1162 = vset.pattern.permute.xlu0 0
        %1163 = vperm.xlu0 %1162, %v1146
        %v1164 = vpop.permute.xlu0 %1163
        %1167 = vset.pattern.permute.xlu0 0
        %1168 = vperm.xlu0 %1167, %v1147
        %v1169 = vpop.permute.xlu0 %1168
        %1172 = vset.pattern.permute.xlu0 0
        %1173 = vperm.xlu0 %1172, %v1148
        %v1174 = vpop.permute.xlu0 %1173
        %1177 = vset.pattern.permute.xlu0 0
        %1178 = vperm.xlu0 %1177, %v1149
        %v1179 = vpop.permute.xlu0 %1178
        %1182 = vset.pattern.permute.xlu0 0
        %1183 = vperm.xlu0 %1182, %v1150
        %v1184 = vpop.permute.xlu0 %1183
        %vm1186 = vcmask 523264
        %v1188 = vsel %vm1186, %v1131, 0
        %v1191 = vsel %vm1186, %v1133, 0
        %v1194 = vsel %vm1186, %v1135, 0
        %v1197 = vsel %vm1186, %v1137, 0
        %v1200 = vsel %vm1186, %v1139, 0
        %v1203 = vsel %vm1186, %v1141, 0
        %v1206 = vsel %vm1186, %v1143, 0
        %1208 = vmatprep.subr.mxu0 %v1113
        %1209 = vmatpush1.msra.mxu0 %v1112
        %1210 = vmatprep.subr.mxu0 %v1111
        %1211 = vmatpush1.msra.mxu0 %v1110
        %1212 = vmatprep.subr.mxu0 %v1109
        %1213 = vmatpush1.msra.mxu0 %v1108
        %1214 = vmatprep.subr.mxu0 %v1107
        %1215 = vmatpush1.msra.mxu0 %v1106
        %1216 = vmatprep.subr.mxu0 %v1105
        %1217 = vmatpush1.msra.mxu0 %v1104
        %1218 = vmatprep.subr.mxu0 %v1103
        %1219 = vmatpush1.msra.mxu0 %v1102
        %1220 = vmatprep.subr.mxu0 %v1101
        %1221 = vmatpush1.msra.mxu0 %v1100
        %1222 = vmatprep.subr.mxu0 %v1099
        %1223 = vmatpush1.msra.mxu0 %v1098
        %1224 = vmatprep.subr.mxu0 %v1097
        %1225 = vmatpush1.msra.mxu0 %v1096
        %1226 = vmatprep.subr.mxu0 %v1095
        %1227 = vmatpush1.msra.mxu0 %v1094
        %1228 = vmatprep.subr.mxu0 %v1093
        %1229 = vmatpush1.msra.mxu0 %v1092
        %1230 = vmatprep.subr.mxu0 %v1091
        %1231 = vmatpush1.msra.mxu0 %v1090
        %1232 = vmatprep.subr.mxu0 %v1089
        %1233 = vmatpush1.msra.mxu0 %v1088
        %1234 = vmatprep.subr.mxu0 %v1087
        %1235 = vmatpush1.msra.mxu0 %v1086
        %1236 = vmatprep.subr.mxu0 %v1085
        %1237 = vmatpush1.msra.mxu0 %v1084
        %1238 = vmatprep.subr.mxu0 %v1083
        %1239 = vmatpush1.msra.mxu0 %v1082
        %1240 = vmatprep.subr.mxu0 0.0
        %1241 = vmatpush2.msra.mxu0 0.0
        %1242 = vmatprep.subr.mxu0 0.0
        %1243 = vmatpush2.msra.mxu0 0.0
        %1244 = vmatprep.subr.mxu0 0.0
        %1245 = vmatpush2.msra.mxu0 0.0
        %1246 = vmatprep.subr.mxu0 0.0
        %1247 = vmatpush2.msra.mxu0 0.0
        %1248 = vmatprep.subr.mxu0 0.0
        %1249 = vmatpush2.msra.mxu0 0.0
        %1250 = vmatprep.subr.mxu0 0.0
        %1251 = vmatpush2.msra.mxu0 0.0
        %1252 = vmatprep.subr.mxu0 0.0
        %1253 = vmatpush2.msra.mxu0 0.0
        %1254 = vmatprep.subr.mxu0 0.0
        %1255 = vmatpush2.msra.mxu0 0.0
        %1256 = vmatprep.subr.mxu0 %v1129
        %1257 = vmatpush2.msra.mxu0 %v1128
        %1258 = vmatprep.subr.mxu0 %v1127
        %1259 = vmatpush2.msra.mxu0 %v1126
        %1260 = vmatprep.subr.mxu0 %v1125
        %1261 = vmatpush2.msra.mxu0 %v1124
        %1262 = vmatprep.subr.mxu0 %v1123
        %1263 = vmatpush2.msra.mxu0 %v1122
        %1264 = vmatprep.subr.mxu0 %v1121
        %1265 = vmatpush2.msra.mxu0 %v1120
        %1266 = vmatprep.subr.mxu0 %v1119
        %1267 = vmatpush2.msra.mxu0 %v1118
        %1268 = vmatprep.subr.mxu0 %v1117
        %1269 = vmatpush2.msra.mxu0 %v1116
        %1270 = vmatprep.subr.mxu0 %v1115
        %1271 = vmatpush2.msra.mxu0 %v1114
        %1272 = vmatprep.mubr.f32.mxu0 %v1188
        %1273 = vmatmul.mubr.f32.gmra.mxu0 %v1130
        %v1274 = vpop.f32.mrf.mxu0
        %v1275 = vadd.f32 %v1154, %v1274
        %v1276 = vpop.f32.mrf.mxu0
        %v1277 = vadd.f32 %v1154, %v1276
        %1278 = vmatprep.mubr.f32.mxu0 %v1191
        %1279 = vmatmul.mubr.f32.gmra.mxu0 %v1132
        %v1280 = vpop.f32.mrf.mxu0
        %v1281 = vadd.f32 %v1159, %v1280
        %v1282 = vpop.f32.mrf.mxu0
        %v1283 = vadd.f32 %v1159, %v1282
        %1284 = vmatprep.mubr.f32.mxu0 %v1194
        %1285 = vmatmul.mubr.f32.gmra.mxu0 %v1134
        %v1286 = vpop.f32.mrf.mxu0
        %v1287 = vadd.f32 %v1164, %v1286
        %v1288 = vpop.f32.mrf.mxu0
        %v1289 = vadd.f32 %v1164, %v1288
        %1290 = vmatprep.mubr.f32.mxu0 %v1197
        %1291 = vmatmul.mubr.f32.gmra.mxu0 %v1136
        %v1292 = vpop.f32.mrf.mxu0
        %v1293 = vadd.f32 %v1169, %v1292
        %v1294 = vpop.f32.mrf.mxu0
        %v1295 = vadd.f32 %v1169, %v1294
        %1296 = vmatprep.mubr.f32.mxu0 %v1200
        %1297 = vmatmul.mubr.f32.gmra.mxu0 %v1138
        %v1298 = vpop.f32.mrf.mxu0
        %v1299 = vadd.f32 %v1174, %v1298
        %v1300 = vpop.f32.mrf.mxu0
        %v1301 = vadd.f32 %v1174, %v1300
        %1302 = vmatprep.mubr.f32.mxu0 %v1203
        %1303 = vmatmul.mubr.f32.gmra.mxu0 %v1140
        %v1304 = vpop.f32.mrf.mxu0
        %v1305 = vadd.f32 %v1179, %v1304
        %v1306 = vpop.f32.mrf.mxu0
        %v1307 = vadd.f32 %v1179, %v1306
        %1308 = vmatprep.mubr.f32.mxu0 %v1206
        %1309 = vmatmul.mubr.f32.gmra.mxu0 %v1142
        %v1310 = vpop.f32.mrf.mxu0
        %v1311 = vadd.f32 %v1184, %v1310
        %v1312 = vpop.f32.mrf.mxu0
        %v1313 = vadd.f32 %v1184, %v1312
        %1314 = vdwg.mxu0
        %v1315 = vmax.f32 %v1275, 0.0
        %v1316 = vmax.f32 %v1277, 0.0
        %v1317 = vmax.f32 %v1281, 0.0
        %v1318 = vmax.f32 %v1283, 0.0
        %v1319 = vmax.f32 %v1287, 0.0
        %v1320 = vmax.f32 %v1289, 0.0
        %v1321 = vmax.f32 %v1293, 0.0
        %v1322 = vmax.f32 %v1295, 0.0
        %v1323 = vmax.f32 %v1299, 0.0
        %v1324 = vmax.f32 %v1301, 0.0
        %v1325 = vmax.f32 %v1305, 0.0
        %v1326 = vmax.f32 %v1307, 0.0
        %v1327 = vmax.f32 %v1311, 0.0
        %v1328 = vmax.f32 %v1313, 0.0
        %v1329 = vld [vmem:[%s3] sm:$0xff]
        %v1330 = vld [vmem:[%s3 + $0x8] sm:$0xff]
        %v1331 = vld [vmem:[%s3 + $0x10] sm:$0xff]
        %v1332 = vld [vmem:[%s3 + $0x18] sm:$0xff]
        %v1333 = vld [vmem:[%s3 + $0x20] sm:$0xff]
        %v1334 = vld [vmem:[%s3 + $0x28] sm:$0xff]
        %v1335 = vld [vmem:[%s3 + $0x30] sm:$0x3]
        %v1336 = vld [vmem:[%s4] sm:$0xff]
        %v1337 = vld [vmem:[%s4 + $0x8] sm:$0xff]
        %v1338 = vld [vmem:[%s4 + $0x10] sm:$0xff]
        %v1339 = vld [vmem:[%s4 + $0x18] sm:$0xff]
        %v1340 = vld [vmem:[%s4 + $0x20] sm:$0xff]
        %v1341 = vld [vmem:[%s4 + $0x28] sm:$0xff]
        %v1342 = vld [vmem:[%s4 + $0x30] sm:$0x3]
        %1344 = vset.pattern.permute.xlu0 0
        %1345 = vperm.xlu0 %1344, %v1336
        %v1346 = vpop.permute.xlu0 %1345
        %1349 = vset.pattern.permute.xlu0 0
        %1350 = vperm.xlu0 %1349, %v1337
        %v1351 = vpop.permute.xlu0 %1350
        %1354 = vset.pattern.permute.xlu0 0
        %1355 = vperm.xlu0 %1354, %v1338
        %v1356 = vpop.permute.xlu0 %1355
        %1359 = vset.pattern.permute.xlu0 0
        %1360 = vperm.xlu0 %1359, %v1339
        %v1361 = vpop.permute.xlu0 %1360
        %1364 = vset.pattern.permute.xlu0 0
        %1365 = vperm.xlu0 %1364, %v1340
        %v1366 = vpop.permute.xlu0 %1365
        %1369 = vset.pattern.permute.xlu0 0
        %1370 = vperm.xlu0 %1369, %v1341
        %v1371 = vpop.permute.xlu0 %1370
        %1374 = vset.pattern.permute.xlu0 0
        %1375 = vperm.xlu0 %1374, %v1342
        %v1376 = vpop.permute.xlu0 %1375
        %vm1382 = vcmask 1044480
        %v1383 = vrot.slane %v737, 3
        %v1384 = vrot.slane %v739, 3
        %v1385 = vsel %vm1382, %v1383, %v1384
        %v1386 = vrot.slane %v738, 3
        %v1387 = vrot.slane %v740, 3
        %v1388 = vsel %vm1382, %v1386, %v1387
        %vm1391 = vcmask 97280
        %v1393 = vsel %vm1391, %v1329, 0
        %v1396 = vsel %vm1391, %v1330, 0
        %v1399 = vsel %vm1391, %v1331, 0
        %v1402 = vsel %vm1391, %v1332, 0
        %v1405 = vsel %vm1391, %v1333, 0
        %v1408 = vsel %vm1391, %v1334, 0
        %v1411 = vsel %vm1391, %v1335, 0
        %vm1413 = vcmask 1043456
        %v1414 = vsel %vm1413, %v1384, 0
        %v1416 = vsel %vm1413, %v1387, 0
        %1418 = vmatprep.subr.mxu0 0.0
        %1419 = vmatpush1.msra.mxu0 0.0
        %1420 = vmatprep.subr.mxu0 0.0
        %1421 = vmatpush1.msra.mxu0 0.0
        %1422 = vmatprep.subr.mxu0 0.0
        %1423 = vmatpush1.msra.mxu0 0.0
        %1424 = vmatprep.subr.mxu0 0.0
        %1425 = vmatpush1.msra.mxu0 0.0
        %1426 = vmatprep.subr.mxu0 0.0
        %1427 = vmatpush1.msra.mxu0 0.0
        %1428 = vmatprep.subr.mxu0 0.0
        %1429 = vmatpush1.msra.mxu0 0.0
        %1430 = vmatprep.subr.mxu0 0.0
        %1431 = vmatpush1.msra.mxu0 0.0
        %1432 = vmatprep.subr.mxu0 0.0
        %1433 = vmatpush1.msra.mxu0 0.0
        %1434 = vmatprep.subr.mxu0 0.0
        %1435 = vmatpush1.msra.mxu0 0.0
        %1436 = vmatprep.subr.mxu0 0.0
        %1437 = vmatpush1.msra.mxu0 0.0
        %1438 = vmatprep.subr.mxu0 0.0
        %1439 = vmatpush1.msra.mxu0 0.0
        %1440 = vmatprep.subr.mxu0 0.0
        %1441 = vmatpush1.msra.mxu0 0.0
        %1442 = vmatprep.subr.mxu0 0.0
        %1443 = vmatpush1.msra.mxu0 0.0
        %1444 = vmatprep.subr.mxu0 0.0
        %1445 = vmatpush1.msra.mxu0 0.0
        %1446 = vmatprep.subr.mxu0 %v1416
        %1447 = vmatpush1.msra.mxu0 %v1414
        %1448 = vmatprep.subr.mxu0 %v1388
        %1449 = vmatpush1.msra.mxu0 %v1385
        %1450 = vmatprep.subr.mxu0 0.0
        %1451 = vmatpush2.msra.mxu0 0.0
        %1452 = vmatprep.subr.mxu0 0.0
        %1453 = vmatpush2.msra.mxu0 0.0
        %1454 = vmatprep.subr.mxu0 0.0
        %1455 = vmatpush2.msra.mxu0 0.0
        %1456 = vmatprep.subr.mxu0 0.0
        %1457 = vmatpush2.msra.mxu0 0.0
        %1458 = vmatprep.subr.mxu0 0.0
        %1459 = vmatpush2.msra.mxu0 0.0
        %1460 = vmatprep.subr.mxu0 0.0
        %1461 = vmatpush2.msra.mxu0 0.0
        %1462 = vmatprep.subr.mxu0 0.0
        %1463 = vmatpush2.msra.mxu0 0.0
        %1464 = vmatprep.subr.mxu0 0.0
        %1465 = vmatpush2.msra.mxu0 0.0
        %1466 = vmatprep.subr.mxu0 0.0
        %1467 = vmatpush2.msra.mxu0 0.0
        %1468 = vmatprep.subr.mxu0 0.0
        %1469 = vmatpush2.msra.mxu0 0.0
        %1470 = vmatprep.subr.mxu0 0.0
        %1471 = vmatpush2.msra.mxu0 0.0
        %1472 = vmatprep.subr.mxu0 0.0
        %1473 = vmatpush2.msra.mxu0 0.0
        %1474 = vmatprep.subr.mxu0 0.0
        %1475 = vmatpush2.msra.mxu0 0.0
        %1476 = vmatprep.subr.mxu0 0.0
        %1477 = vmatpush2.msra.mxu0 0.0
        %1478 = vmatprep.subr.mxu0 0.0
        %1479 = vmatpush2.msra.mxu0 0.0
        %1480 = vmatprep.subr.mxu0 0.0
        %1481 = vmatpush2.msra.mxu0 0.0
        %1482 = vmatprep.mubr.f32.mxu0 0.0
        %1483 = vmatmul.mubr.f32.gmra.mxu0 %v1393
        %v1484 = vpop.f32.mrf.mxu0
        %v1485 = vadd.f32 %v1346, %v1484
        %v1486 = vpop.f32.mrf.mxu0
        %v1487 = vadd.f32 %v1346, %v1486
        %1488 = vmatprep.mubr.f32.mxu0 0.0
        %1489 = vmatmul.mubr.f32.gmra.mxu0 %v1396
        %v1490 = vpop.f32.mrf.mxu0
        %v1491 = vadd.f32 %v1351, %v1490
        %v1492 = vpop.f32.mrf.mxu0
        %v1493 = vadd.f32 %v1351, %v1492
        %1494 = vmatprep.mubr.f32.mxu0 0.0
        %1495 = vmatmul.mubr.f32.gmra.mxu0 %v1399
        %v1496 = vpop.f32.mrf.mxu0
        %v1497 = vadd.f32 %v1356, %v1496
        %v1498 = vpop.f32.mrf.mxu0
        %v1499 = vadd.f32 %v1356, %v1498
        %1500 = vmatprep.mubr.f32.mxu0 0.0
        %1501 = vmatmul.mubr.f32.gmra.mxu0 %v1402
        %v1502 = vpop.f32.mrf.mxu0
        %v1503 = vadd.f32 %v1361, %v1502
        %v1504 = vpop.f32.mrf.mxu0
        %v1505 = vadd.f32 %v1361, %v1504
        %1506 = vmatprep.mubr.f32.mxu0 0.0
        %1507 = vmatmul.mubr.f32.gmra.mxu0 %v1405
        %v1508 = vpop.f32.mrf.mxu0
        %v1509 = vadd.f32 %v1366, %v1508
        %v1510 = vpop.f32.mrf.mxu0
        %v1511 = vadd.f32 %v1366, %v1510
        %1512 = vmatprep.mubr.f32.mxu0 0.0
        %1513 = vmatmul.mubr.f32.gmra.mxu0 %v1408
        %v1514 = vpop.f32.mrf.mxu0
        %v1515 = vadd.f32 %v1371, %v1514
        %v1516 = vpop.f32.mrf.mxu0
        %v1517 = vadd.f32 %v1371, %v1516
        %1518 = vmatprep.mubr.f32.mxu0 0.0
        %1519 = vmatmul.mubr.f32.gmra.mxu0 %v1411
        %v1520 = vpop.f32.mrf.mxu0
        %v1521 = vadd.f32 %v1376, %v1520
        %v1522 = vpop.f32.mrf.mxu0
        %v1523 = vadd.f32 %v1376, %v1522
        %1524 = vdwg.mxu0
        %v1525 = vmax.f32 %v1485, 0.0
        %v1526 = vmax.f32 %v1487, 0.0
        %v1527 = vmax.f32 %v1491, 0.0
        %v1528 = vmax.f32 %v1493, 0.0
        %v1529 = vmax.f32 %v1497, 0.0
        %v1530 = vmax.f32 %v1499, 0.0
        %v1531 = vmax.f32 %v1503, 0.0
        %v1532 = vmax.f32 %v1505, 0.0
        %v1533 = vmax.f32 %v1509, 0.0
        %v1534 = vmax.f32 %v1511, 0.0
        %v1535 = vmax.f32 %v1515, 0.0
        %v1536 = vmax.f32 %v1517, 0.0
        %v1537 = vmax.f32 %v1521, 0.0
        %v1538 = vmax.f32 %v1523, 0.0
        %v1539 = vld [vmem:[%s5] sm:$0xff]
        %v1540 = vld [vmem:[%s5 + $0x8] sm:$0x1]
        %v1541 = vld [vmem:[%s6] sm:$0xff]
        %v1542 = vld [vmem:[%s6 + $0x8] sm:$0x1]
        %vm1543 = vcmask 408576
        %v1545 = vsel %vm1543, %v1541, 0
        %v1548 = vsel %vm1543, %v1542, 0
        %vm1550 = vcmask 1041408
        %v1552 = vsel %vm1550, %v1537, 0
        %v1555 = vsel %vm1550, %v1538, 0
        %1557 = vmatprep.subr.mxu0 0.0
        %1558 = vmatpush1.msra.mxu0 0.0
        %1559 = vmatprep.subr.mxu0 0.0
        %1560 = vmatpush1.msra.mxu0 0.0
        %1561 = vmatprep.subr.mxu0 0.0
        %1562 = vmatpush1.msra.mxu0 0.0
        %1563 = vmatprep.subr.mxu0 0.0
        %1564 = vmatpush1.msra.mxu0 0.0
        %1565 = vmatprep.subr.mxu0 0.0
        %1566 = vmatpush1.msra.mxu0 0.0
        %1567 = vmatprep.subr.mxu0 0.0
        %1568 = vmatpush1.msra.mxu0 0.0
        %1569 = vmatprep.subr.mxu0 0.0
        %1570 = vmatpush1.msra.mxu0 0.0
        %1571 = vmatprep.subr.mxu0 0.0
        %1572 = vmatpush1.msra.mxu0 0.0
        %1573 = vmatprep.subr.mxu0 0.0
        %1574 = vmatpush1.msra.mxu0 0.0
        %1575 = vmatprep.subr.mxu0 %v1555
        %1576 = vmatpush1.msra.mxu0 %v1552
        %1577 = vmatprep.subr.mxu0 %v1536
        %1578 = vmatpush1.msra.mxu0 %v1535
        %1579 = vmatprep.subr.mxu0 %v1534
        %1580 = vmatpush1.msra.mxu0 %v1533
        %1581 = vmatprep.subr.mxu0 %v1532
        %1582 = vmatpush1.msra.mxu0 %v1531
        %1583 = vmatprep.subr.mxu0 %v1530
        %1584 = vmatpush1.msra.mxu0 %v1529
        %1585 = vmatprep.subr.mxu0 %v1528
        %1586 = vmatpush1.msra.mxu0 %v1527
        %1587 = vmatprep.subr.mxu0 %v1526
        %1588 = vmatpush1.msra.mxu0 %v1525
        %1589 = vmatprep.subr.mxu0 0.0
        %1590 = vmatpush2.msra.mxu0 0.0
        %1591 = vmatprep.subr.mxu0 0.0
        %1592 = vmatpush2.msra.mxu0 0.0
        %1593 = vmatprep.subr.mxu0 0.0
        %1594 = vmatpush2.msra.mxu0 0.0
        %1595 = vmatprep.subr.mxu0 0.0
        %1596 = vmatpush2.msra.mxu0 0.0
        %1597 = vmatprep.subr.mxu0 0.0
        %1598 = vmatpush2.msra.mxu0 0.0
        %1599 = vmatprep.subr.mxu0 0.0
        %1600 = vmatpush2.msra.mxu0 0.0
        %1601 = vmatprep.subr.mxu0 0.0
        %1602 = vmatpush2.msra.mxu0 0.0
        %1603 = vmatprep.subr.mxu0 0.0
        %1604 = vmatpush2.msra.mxu0 0.0
        %1605 = vmatprep.subr.mxu0 0.0
        %1606 = vmatpush2.msra.mxu0 0.0
        %1607 = vmatprep.subr.mxu0 0.0
        %1608 = vmatpush2.msra.mxu0 0.0
        %1609 = vmatprep.subr.mxu0 0.0
        %1610 = vmatpush2.msra.mxu0 0.0
        %1611 = vmatprep.subr.mxu0 0.0
        %1612 = vmatpush2.msra.mxu0 0.0
        %1613 = vmatprep.subr.mxu0 0.0
        %1614 = vmatpush2.msra.mxu0 0.0
        %1615 = vmatprep.subr.mxu0 0.0
        %1616 = vmatpush2.msra.mxu0 0.0
        %1617 = vmatprep.subr.mxu0 0.0
        %1618 = vmatpush2.msra.mxu0 0.0
        %1619 = vmatprep.subr.mxu0 0.0
        %1620 = vmatpush2.msra.mxu0 0.0
        %1621 = vmatprep.mubr.f32.mxu0 0.0
        %1622 = vmatmul.mubr.f32.gmra.mxu0 %v1545
        %v1623 = vpop.f32.mrf.mxu0
        %v1624 = vadd.f32 0.0, %v1623
        %v1625 = vpop.f32.mrf.mxu0
        %v1626 = vadd.f32 0.0, %v1625
        %1627 = vmatprep.mubr.f32.mxu0 0.0
        %1628 = vmatmul.mubr.f32.gmra.mxu0 %v1548
        %v1629 = vpop.f32.mrf.mxu0
        %v1630 = vadd.f32 0.0, %v1629
        %v1631 = vpop.f32.mrf.mxu0
        %v1632 = vadd.f32 0.0, %v1631
        %1633 = vdwg.mxu0
        %v1635 = vsel %vm1543, %v1539, 0
        %v1638 = vsel %vm1543, %v1540, 0
        %v1641 = vsel %vm1550, %v1327, 0
        %v1644 = vsel %vm1550, %v1328, 0
        %1646 = vmatprep.subr.mxu0 0.0
        %1647 = vmatpush1.msra.mxu0 0.0
        %1648 = vmatprep.subr.mxu0 0.0
        %1649 = vmatpush1.msra.mxu0 0.0
        %1650 = vmatprep.subr.mxu0 0.0
        %1651 = vmatpush1.msra.mxu0 0.0
        %1652 = vmatprep.subr.mxu0 0.0
        %1653 = vmatpush1.msra.mxu0 0.0
        %1654 = vmatprep.subr.mxu0 0.0
        %1655 = vmatpush1.msra.mxu0 0.0
        %1656 = vmatprep.subr.mxu0 0.0
        %1657 = vmatpush1.msra.mxu0 0.0
        %1658 = vmatprep.subr.mxu0 0.0
        %1659 = vmatpush1.msra.mxu0 0.0
        %1660 = vmatprep.subr.mxu0 0.0
        %1661 = vmatpush1.msra.mxu0 0.0
        %1662 = vmatprep.subr.mxu0 0.0
        %1663 = vmatpush1.msra.mxu0 0.0
        %1664 = vmatprep.subr.mxu0 %v1644
        %1665 = vmatpush1.msra.mxu0 %v1641
        %1666 = vmatprep.subr.mxu0 %v1326
        %1667 = vmatpush1.msra.mxu0 %v1325
        %1668 = vmatprep.subr.mxu0 %v1324
        %1669 = vmatpush1.msra.mxu0 %v1323
        %1670 = vmatprep.subr.mxu0 %v1322
        %1671 = vmatpush1.msra.mxu0 %v1321
        %1672 = vmatprep.subr.mxu0 %v1320
        %1673 = vmatpush1.msra.mxu0 %v1319
        %1674 = vmatprep.subr.mxu0 %v1318
        %1675 = vmatpush1.msra.mxu0 %v1317
        %1676 = vmatprep.subr.mxu0 %v1316
        %1677 = vmatpush1.msra.mxu0 %v1315
        %1678 = vmatprep.subr.mxu0 0.0
        %1679 = vmatpush2.msra.mxu0 0.0
        %1680 = vmatprep.subr.mxu0 0.0
        %1681 = vmatpush2.msra.mxu0 0.0
        %1682 = vmatprep.subr.mxu0 0.0
        %1683 = vmatpush2.msra.mxu0 0.0
        %1684 = vmatprep.subr.mxu0 0.0
        %1685 = vmatpush2.msra.mxu0 0.0
        %1686 = vmatprep.subr.mxu0 0.0
        %1687 = vmatpush2.msra.mxu0 0.0
        %1688 = vmatprep.subr.mxu0 0.0
        %1689 = vmatpush2.msra.mxu0 0.0
        %1690 = vmatprep.subr.mxu0 0.0
        %1691 = vmatpush2.msra.mxu0 0.0
        %1692 = vmatprep.subr.mxu0 0.0
        %1693 = vmatpush2.msra.mxu0 0.0
        %1694 = vmatprep.subr.mxu0 0.0
        %1695 = vmatpush2.msra.mxu0 0.0
        %1696 = vmatprep.subr.mxu0 0.0
        %1697 = vmatpush2.msra.mxu0 0.0
        %1698 = vmatprep.subr.mxu0 0.0
        %1699 = vmatpush2.msra.mxu0 0.0
        %1700 = vmatprep.subr.mxu0 0.0
        %1701 = vmatpush2.msra.mxu0 0.0
        %1702 = vmatprep.subr.mxu0 0.0
        %1703 = vmatpush2.msra.mxu0 0.0
        %1704 = vmatprep.subr.mxu0 0.0
        %1705 = vmatpush2.msra.mxu0 0.0
        %1706 = vmatprep.subr.mxu0 0.0
        %1707 = vmatpush2.msra.mxu0 0.0
        %1708 = vmatprep.subr.mxu0 0.0
        %1709 = vmatpush2.msra.mxu0 0.0
        %1710 = vmatprep.mubr.f32.mxu0 0.0
        %1711 = vmatmul.mubr.f32.gmra.mxu0 %v1635
        %v1712 = vpop.f32.mrf.mxu0
        %v1713 = vadd.f32 %v1624, %v1712
        %v1714 = vpop.f32.mrf.mxu0
        %v1715 = vadd.f32 %v1626, %v1714
        %1716 = vmatprep.mubr.f32.mxu0 0.0
        %1717 = vmatmul.mubr.f32.gmra.mxu0 %v1638
        %v1718 = vpop.f32.mrf.mxu0
        %v1719 = vadd.f32 %v1630, %v1718
        %v1720 = vpop.f32.mrf.mxu0
        %v1721 = vadd.f32 %v1632, %v1720
        %1722 = vdwg.mxu0
        %v1723 = vld [vmem:[%s7] sm:$0xff]
        %v1724 = vld [vmem:[%s7 + $0x8] sm:$0x1]
        %1726 = vset.pattern.permute.xlu0 0
        %1727 = vperm.xlu0 %1726, %v1723
        %v1728 = vpop.permute.xlu0 %1727
        %1731 = vset.pattern.permute.xlu0 0
        %1732 = vperm.xlu0 %1731, %v1724
        %v1733 = vpop.permute.xlu0 %1732
        %v1735 = vadd.f32 %v1713, %v1728
        %v1736 = vadd.f32 %v1715, %v1728
        %v1737 = vadd.f32 %v1719, %v1733
        %v1738 = vadd.f32 %v1721, %v1733
        %vm1739 = vcmask 1040384
        %v1740 = vsel %vm1739, %v1737, -inf
        %v1741 = vmax.f32 %v1735, %v1740
        %v1742 = vrot.slane %v1741, 4
        %v1743 = vmax.f32 %v1741, %v1742
        %v1744 = vrot.slane %v1743, 2
        %v1745 = vmax.f32 %v1743, %v1744
        %v1746 = vrot.slane %v1745, 1
        %v1747 = vmax.f32 %v1745, %v1746
        %v1748 = vsel %vm1739, %v1738, -inf
        %v1749 = vmax.f32 %v1736, %v1748
        %v1750 = vrot.slane %v1749, 4
        %v1751 = vmax.f32 %v1749, %v1750
        %v1752 = vrot.slane %v1751, 2
        %v1753 = vmax.f32 %v1751, %v1752
        %v1754 = vrot.slane %v1753, 1
        %v1755 = vmax.f32 %v1753, %v1754
        %v1756 = vsub.f32 %v1735, %v1747
        %v1757 = vsub.f32 %v1736, %v1755
        %v1758 = vsub.f32 %v1737, %v1747
        %v1759 = vsub.f32 %v1738, %v1755
        %v1760 = vmul.f32 %v1756, 1.442695
        %v1761 = vpow.pop %v1760
        %v1762 = vmul.f32 %v1757, 1.442695
        %v1763 = vpow.pop %v1762
        %v1764 = vmul.f32 %v1758, 1.442695
        %v1765 = vpow.pop %v1764
        %v1766 = vmul.f32 %v1759, 1.442695
        %v1767 = vpow.pop %v1766
        %v1768 = vsel %vm1739, %v1765, 0.0
        %v1769 = vadd.f32 %v1761, %v1768
        %v1770 = vrot.slane %v1769, 4
        %v1771 = vadd.f32 %v1769, %v1770
        %v1772 = vrot.slane %v1771, 2
        %v1773 = vadd.f32 %v1771, %v1772
        %v1774 = vrot.slane %v1773, 1
        %v1775 = vadd.f32 %v1773, %v1774
        %v1776 = vsel %vm1739, %v1767, 0.0
        %v1777 = vadd.f32 %v1763, %v1776
        %v1778 = vrot.slane %v1777, 4
        %v1779 = vadd.f32 %v1777, %v1778
        %v1780 = vrot.slane %v1779, 2
        %v1781 = vadd.f32 %v1779, %v1780
        %v1782 = vrot.slane %v1781, 1
        %v1783 = vadd.f32 %v1781, %v1782
        %v1784 = vlog2.pop %v1775
        %v1785 = vmul.f32 %v1784, 0.6931472
        %v1786 = vlog2.pop %v1783
        %v1787 = vmul.f32 %v1786, 0.6931472
        %v1788 = vsub.f32 %v1756, %v1785
        %v1789 = vsub.f32 %v1757, %v1787
        %v1790 = vsub.f32 %v1758, %v1785
        %v1791 = vsub.f32 %v1759, %v1787
        %1792 = vst [vmem:[%s722] sm:$0xff] %v1788
        %1793 = vst [vmem:[%s722 + $0x8] sm:$0xff] %v1789
        %1794 = vst [vmem:[%s722 + $0x10] sm:$0x1] %v1790
        %1795 = vst [vmem:[%s722 + $0x18] sm:$0x1] %v1791
        %s1796 = sand.u32 %s203, 1
        %s1797 = scalar_lea.sflag [#allocation4], %s1796
        %s1798 = sand.u32 %s203, 1
        %s1799 = smul.addr %s1798, 32
        %s1800 = scalar_lea.vmem [#allocation3], %s1799
        // Predicated region
        $region119: #{tpu_custom_call.1} parent=113 // pred_check
          %p1801 = pneg %p213
        $region120: #{tpu_custom_call.1} parent=113 // pred_check_branch
          %1803 = sbr.rel (%p1801) target = $region122
        $region121: #{tpu_custom_call.1} parent=113 // pred_region
          %s1804 = smul.u32 2, %s22
          %s1805 = ssub.s32 3, %s1804
          %p1806 = scmp.lt.s32.totalorder %s1805, 2
          %s1807 = scalar_select %p1806, %s1805, 2
          %s1808 = smul.u32 256, %s1807
          %s1810 = ssub.s32 512, %s1808
          %1811 = vsyncadd %s1797, %s1810
          %p1812 = scmp.ne.s32.totalorder 0, %s1808
          %s1813 = smul.addr %s1804, 128
          %s1814 = scalar_lea.hbm %s8, %s1813
          %s1815 = smul.u32 %s1807, 8
          %s1816 = smul.u32 %s1815, 2
          %s1817 = sshll.u32 %s1800, 4
          %s1818 = int_to_ptr.vmem [resolvable:$true] %s1817
          %s1819 = sshll.u32 %s1816, 4
          %1823 = dma.vmem_to_hbm [thread:$0]  (%p1812), %s1818, %s1819, %s1814, %s1797, 256, 384, %s1815
        $region122: #{tpu_custom_call.1} parent=113 // pred_fallthru
          _
      $region114: #{tpu_custom_call.1} parent=5 // pred_fallthru
        _
      %p1824 = scmp.le.s32.totalorder 2, %s17
      // Predicated region
      $region123: #{tpu_custom_call.1} parent=5 // pred_check
        %p1825 = pneg %p1824
      $region124: #{tpu_custom_call.1} parent=5 // pred_check_branch
        %1827 = sbr.rel (%p1825) target = $region126
      $region125: #{tpu_custom_call.1} parent=5 // pred_region
        %s1828 = ssub.s32 %s17, 2
        // Predicated region
        $region127: #{tpu_custom_call.1} parent=125 // pred_check
          %p1829 = pneg %p219
        $region128: #{tpu_custom_call.1} parent=125 // pred_check_branch
          %1831 = sbr.rel (%p1829) target = $region130
        $region129: #{tpu_custom_call.1} parent=125 // pred_region
          %s1832 = sand.u32 %s204, 1
          %s1833 = scalar_lea.sflag [#allocation4], %s1832
          %s1834 = sand.u32 %s204, 1
          %s1835 = smul.addr %s1834, 32
          %s1836 = scalar_lea.vmem [#allocation3], %s1835
          %1837 = dma.done %s1833, 512
        $region130: #{tpu_custom_call.1} parent=125 // pred_fallthru
          _
      $region126: #{tpu_custom_call.1} parent=5 // pred_fallthru
        _
    $region6: #{tpu_custom_call.1} parent=1 // loop_footer
      %s21 = sadd.s32 1, %s17
    $region7: #{tpu_custom_call.1} parent=1 // loop_footer_branch
      %16 = sbr.rel target = $region3
    $region8: #{tpu_custom_call.1} parent=1 // loop_exit
      _
    %1838 = vsyncpa [#allocation4], 1
    %s1839 = scalar_lea.sflag [#allocation4], 1
    %1840 = vsyncpa %s1839, 1

</llo_original>
